<compile_context>
chip_gen: v7x
topology: tpu7x:2x2x1
jax: 0.10.0
libtpu: 0.0.40
codegen_flags: <defaults>
</compile_context>

<pallas_src>
import functools
import math

import jax
import jax.numpy as jnp
from jax.experimental import pallas as pl
from jax.experimental.pallas import tpu as pltpu


# ----------------------------------------------------------------------------
# Fused kernel
# ----------------------------------------------------------------------------
def _elu(z):
    # clamp so the untaken exp branch cannot overflow for large positive z
    return jnp.where(z > 0.0, z, jnp.exp(jnp.minimum(z, 0.0)) - 1.0)


def mmgnn_kernel(x_ref, adj_ref, fc0_w_ref, fc0_b_ref,
                 conv_w_ref, watt_k_ref, watt_q_ref,
                 fc1_w_ref, fc1_b_ref, o_ref, *, alpha, beta):
    f32 = jnp.float32
    x = x_ref[...]
    adj = adj_ref[...]

    # ---- input fc + ReLU ----------------------------------------------------
    h = jnp.dot(x, fc0_w_ref[...], preferred_element_type=f32) + fc0_b_ref[...]
    h = jnp.maximum(h, 0.0)
    h0 = h
    n, feat = h.shape                      # static Python ints
    nlayers = conv_w_ref.shape[0]

    # ---- hoisted moments (depend only on adj, h0) -----------------------------
    # one lane-dense [N,N] @ [N,3F] matmul instead of 3 per layer
    powers = jnp.concatenate([h0, h0 * h0, h0 * h0 * h0], axis=1)        # [N, 3F]
    m = jnp.dot(adj, powers, preferred_element_type=f32)                 # [N, 3F]
    mu = m[:, :feat]
    sigma = m[:, feat:2 * feat]
    gamma = m[:, 2 * feat:]

    sigma = jnp.sqrt(jnp.where(sigma == 0.0, 1e-16, sigma))
    gamma = jnp.where(gamma == 0.0, 1e-16, gamma)
    sign = jnp.where(gamma < 0.0, -1.0, 1.0)
    gamma = sign * jnp.exp(jnp.log(jnp.abs(gamma)) * (1.0 / 3.0))        # signed cbrt

    # single deduplicated moment buffer; moments read back as sublane slices
    keys = jnp.concatenate([mu, sigma, gamma], axis=0)                   # [3N, F]
    del mu, sigma, gamma

    # hoisted key projections for all layers: [3N, F] @ [F, L*F]
    ek_all = jnp.dot(keys, watt_k_ref[...], preferred_element_type=f32)  # [3N, L*F]

    # ---- MMConv layers (Python-unrolled, everything resident on-chip) ---------
    for l in range(nlayers):
        w = conv_w_ref[l]                  # [F, F], theta already folded in
        wq = watt_q_ref[l]                 # [F, F]

        # GCNII-style propagation; at layer 0 h == h0 so adj @ h == keys[:n] (mu)
        hi = keys[:n] if l == 0 else jnp.dot(adj, h, preferred_element_type=f32)
        support = (1.0 - alpha) * hi + alpha * h0
        output = jnp.dot(support, w, preferred_element_type=f32)

        # attention: key projection (precomputed) + query projection, broadcast add
        e_q = jnp.dot(output, wq, preferred_element_type=f32)            # [N, F]
        ek = ek_all[:, l * feat:(l + 1) * feat]                          # [3N, F]
        e_mu = _elu(ek[:n] + e_q)
        e_si = _elu(ek[n:2 * n] + e_q)
        e_ga = _elu(ek[2 * n:] + e_q)

        m_max = jnp.maximum(jnp.maximum(e_mu, e_si), e_ga)
        a_mu = jnp.exp(e_mu - m_max)
        a_si = jnp.exp(e_si - m_max)
        a_ga = jnp.exp(e_ga - m_max)
        num = keys[:n] * a_mu + keys[n:2 * n] * a_si + keys[2 * n:] * a_ga
        out_moment = num / (a_mu + a_si + a_ga)

        # outer ReLU from the MMGNN loop
        h = jnp.maximum((1.0 - beta) * output + beta * out_moment, 0.0)

    # ---- output fc + log_softmax (only write is this final [N, nclass] tile) --
    logits = jnp.dot(h, fc1_w_ref[...], preferred_element_type=f32) + fc1_b_ref[...]
    zmax = jnp.max(logits, axis=-1, keepdims=True)
    z = logits - zmax
    o_ref[...] = z - jnp.log(jnp.sum(jnp.exp(z), axis=-1, keepdims=True))


# ----------------------------------------------------------------------------
# Wrapper: single gridless pallas_call, all operands VMEM-resident
# ----------------------------------------------------------------------------
def mmgnn_forward(x, adj, params, *, lamda, alpha, beta=0.1):
    n, nfeat = x.shape
    nhid = params["fc0_w"].shape[1]
    nclass = params["fc1_w"].shape[1]
    nlayers = len(params["conv_w"])

    # fold theta into the layer weight: W'_l = theta*W + (1-theta)*I
    thetas = [math.log(lamda / (i + 1) + 1.0) for i in range(nlayers)]
    eye = jnp.eye(nhid, dtype=jnp.float32)
    conv_w = jnp.stack(
        [t * w + (1.0 - t) * eye for t, w in zip(thetas, params["conv_w"])], axis=0)

    # split w_att into key / query halves; keys half flattened to [F, L*F]
    watt = jnp.stack(params["conv_watt"], axis=0)                      # [L, 2F, F]
    watt_k = jnp.transpose(watt[:, :nhid, :], (1, 0, 2)).reshape(nhid, nlayers * nhid)
    watt_q = watt[:, nhid:, :]                                         # [L, F, F]

    kernel = functools.partial(mmgnn_kernel, alpha=alpha, beta=beta)
    vmem = lambda: pl.BlockSpec(memory_space=pltpu.MemorySpace.VMEM)
    return pl.pallas_call(
        kernel,
        out_shape=jax.ShapeDtypeStruct((n, nclass), jnp.float32),
        in_specs=[vmem() for _ in range(9)],
        out_specs=vmem(),
    )(x, adj, params["fc0_w"], params["fc0_b"], conv_w, watt_k, watt_q,
      params["fc1_w"], params["fc1_b"])


# ----------------------------------------------------------------------------
# Pure-JAX reference (for the sanity check)
# ----------------------------------------------------------------------------
def _ref_forward(x, adj, params, *, lamda, alpha, beta=0.1):
    h = jnp.maximum(x @ params["fc0_w"] + params["fc0_b"], 0.0)
    h0 = h
    for i, (W, wa) in enumerate(zip(params["conv_w"], params["conv_watt"])):
        F = h.shape[1]
        theta = math.log(lamda / (i + 1) + 1.0)
        hi = adj @ h
        support = (1 - alpha) * hi + alpha * h0
        output = theta * (support @ W) + (1 - theta) * support
        mu = adj @ h0
        sigma = adj @ (h0 ** 2)
        sigma = jnp.sqrt(jnp.where(sigma == 0, 1e-16, sigma))
        gamma = adj @ (h0 ** 3)
        gamma = jnp.where(gamma == 0, 1e-16, gamma)
        gamma = jnp.sign(gamma) * jnp.abs(gamma) ** (1.0 / 3.0)
        moms = jnp.stack([mu, sigma, gamma], axis=1)                 # [N,3,F]
        q = jnp.concatenate([output] * 3, axis=0)                    # [3N,F]
        k = jnp.concatenate([mu, sigma, gamma], axis=0)              # [3N,F]
        e = jax.nn.elu(jnp.concatenate([k, q], axis=1) @ wa)         # [3N,F]
        att = jax.nn.softmax(e.reshape(3, -1, F).transpose(1, 0, 2), axis=1)
        out_m = (moms * att).sum(axis=1)
        h = jnp.maximum((1 - beta) * output + beta * out_m, 0.0)
    logits = h @ params["fc1_w"] + params["fc1_b"]
    return jax.nn.log_softmax(logits, axis=1)


# ----------------------------------------------------------------------------
# Main
# ----------------------------------------------------------------------------
if __name__ == "__main__":
    N, nfeat, nhidden, nclass, nlayers = 64, 16, 32, 8, 2
    lamda, alpha = 0.5, 0.1

    key = jax.random.PRNGKey(0)
    keys = jax.random.split(key, 8 + 2 * nlayers)

    # node features
    x = jax.random.normal(keys[0], (N, nfeat), dtype=jnp.float32)

    # dense row-normalized adjacency with self loops
    a = (jax.random.uniform(keys[1], (N, N)) < 0.1).astype(jnp.float32)
    a = jnp.maximum(a, a.T) + jnp.eye(N, dtype=jnp.float32)
    adj = a / jnp.sum(a, axis=1, keepdims=True)

    # parameters (deterministic synthetic init, same shapes as the torch module)
    s0 = 1.0 / math.sqrt(nfeat)
    s1 = 1.0 / math.sqrt(nhidden)
    params = {
        "fc0_w": jax.random.uniform(keys[2], (nfeat, nhidden), minval=-s0, maxval=s0),
        "fc0_b": jax.random.uniform(keys[3], (1, nhidden), minval=-s0, maxval=s0),
        "fc1_w": jax.random.uniform(keys[4], (nhidden, nclass), minval=-s1, maxval=s1),
        "fc1_b": jax.random.uniform(keys[5], (1, nclass), minval=-s1, maxval=s1),
        "conv_w": [
            jax.random.uniform(keys[6 + 2 * i], (nhidden, nhidden), minval=-s1, maxval=s1)
            for i in range(nlayers)
        ],
        "conv_watt": [
            jax.random.uniform(keys[7 + 2 * i], (2 * nhidden, nhidden), minval=-s1, maxval=s1)
            for i in range(nlayers)
        ],
    }

    out = mmgnn_forward(x, adj, params, lamda=lamda, alpha=alpha)
    out = jax.block_until_ready(out)

    ref = _ref_forward(x, adj, params, lamda=lamda, alpha=alpha)
    assert out.shape == (N, nclass)
    assert jnp.allclose(out, ref, atol=1e-4, rtol=1e-4), "mismatch vs. JAX reference"

    print("KERNEL_OK")
</pallas_src>

<mosaic_0001>
module attributes {stable_mosaic.version = 11 : i64} {
  func.func @mmgnn_kernel(%arg0: memref<64x16xf32, #tpu.memory_space<vmem>>, %arg1: memref<64x64xf32, #tpu.memory_space<vmem>>, %arg2: memref<16x32xf32, #tpu.memory_space<vmem>>, %arg3: memref<1x32xf32, #tpu.memory_space<vmem>>, %arg4: memref<2x32x32xf32, #tpu.memory_space<vmem>>, %arg5: memref<32x64xf32, #tpu.memory_space<vmem>>, %arg6: memref<2x32x32xf32, #tpu.memory_space<vmem>>, %arg7: memref<32x8xf32, #tpu.memory_space<vmem>>, %arg8: memref<1x8xf32, #tpu.memory_space<vmem>>, %arg9: memref<64x8xf32, #tpu.memory_space<vmem>>) attributes {dimension_semantics = [], scalar_prefetch = 0 : i64, scratch_operands = 0 : i64, tpu.core_type = #tpu.core_type<tc>} {
    %c0 = arith.constant 0 : index
    %c0_0 = arith.constant 0 : index
    %0 = vector.load %arg0[%c0, %c0_0] : memref<64x16xf32, #tpu.memory_space<vmem>>, vector<64x16xf32>
    %c0_1 = arith.constant 0 : index
    %c0_2 = arith.constant 0 : index
    %1 = vector.load %arg1[%c0_1, %c0_2] : memref<64x64xf32, #tpu.memory_space<vmem>>, vector<64x64xf32>
    %c0_3 = arith.constant 0 : index
    %c0_4 = arith.constant 0 : index
    %2 = vector.load %arg2[%c0_3, %c0_4] : memref<16x32xf32, #tpu.memory_space<vmem>>, vector<16x32xf32>
    %cst = arith.constant dense<0.000000e+00> : vector<64x32xf32>
    %3 = tpu.matmul %0, %2, %cst {dimension_numbers = #tpu.dot_dimension_numbers<[1], [0], [0], [1], [0, 0, 1, 1], [], []>} : vector<64x16xf32>, vector<16x32xf32>, vector<64x32xf32> -> vector<64x32xf32>
    %c0_5 = arith.constant 0 : index
    %c0_6 = arith.constant 0 : index
    %4 = vector.load %arg3[%c0_5, %c0_6] : memref<1x32xf32, #tpu.memory_space<vmem>>, vector<1x32xf32>
    %5 = vector.broadcast %4 : vector<1x32xf32> to vector<64x32xf32>
    %6 = arith.addf %3, %5 : vector<64x32xf32>
    %cst_7 = arith.constant 0.000000e+00 : f32
    %7 = vector.broadcast %cst_7 : f32 to vector<64x32xf32>
    %8 = arith.maximumf %6, %7 : vector<64x32xf32>
    %9 = arith.mulf %8, %8 : vector<64x32xf32>
    %10 = arith.mulf %8, %8 : vector<64x32xf32>
    %11 = arith.mulf %10, %8 : vector<64x32xf32>
    %12 = tpu.concatenate %8, %9, %11 in 1 : vector<64x32xf32>, vector<64x32xf32>, vector<64x32xf32> -> vector<64x96xf32>
    %cst_8 = arith.constant dense<0.000000e+00> : vector<64x96xf32>
    %13 = tpu.matmul %1, %12, %cst_8 {dimension_numbers = #tpu.dot_dimension_numbers<[1], [0], [0], [1], [0, 0, 1, 1], [], []>} : vector<64x64xf32>, vector<64x96xf32>, vector<64x96xf32> -> vector<64x96xf32>
    %14 = vector.extract_strided_slice %13 {offsets = [0, 0], sizes = [64, 32], strides = [1, 1]} : vector<64x96xf32> to vector<64x32xf32>
    %15 = vector.extract_strided_slice %13 {offsets = [0, 32], sizes = [64, 32], strides = [1, 1]} : vector<64x96xf32> to vector<64x32xf32>
    %16 = vector.extract_strided_slice %13 {offsets = [0, 64], sizes = [64, 32], strides = [1, 1]} : vector<64x96xf32> to vector<64x32xf32>
    %cst_9 = arith.constant 0.000000e+00 : f32
    %17 = vector.broadcast %cst_9 : f32 to vector<64x32xf32>
    %18 = arith.cmpf oeq, %15, %17 : vector<64x32xf32>
    %cst_10 = arith.constant 1.000000e-16 : f32
    %19 = vector.broadcast %cst_10 : f32 to vector<64x32xf32>
    %20 = arith.select %18, %19, %15 : vector<64x32xi1>, vector<64x32xf32>
    %21 = math.sqrt %20 : vector<64x32xf32>
    %cst_11 = arith.constant 0.000000e+00 : f32
    %22 = vector.broadcast %cst_11 : f32 to vector<64x32xf32>
    %23 = arith.cmpf oeq, %16, %22 : vector<64x32xf32>
    %cst_12 = arith.constant 1.000000e-16 : f32
    %24 = vector.broadcast %cst_12 : f32 to vector<64x32xf32>
    %25 = arith.select %23, %24, %16 : vector<64x32xi1>, vector<64x32xf32>
    %cst_13 = arith.constant 0.000000e+00 : f32
    %26 = vector.broadcast %cst_13 : f32 to vector<64x32xf32>
    %27 = arith.cmpf olt, %25, %26 : vector<64x32xf32>
    %cst_14 = arith.constant -1.000000e+00 : f32
    %cst_15 = arith.constant 1.000000e+00 : f32
    %28 = vector.broadcast %cst_14 : f32 to vector<64x32xf32>
    %29 = vector.broadcast %cst_15 : f32 to vector<64x32xf32>
    %30 = arith.select %27, %28, %29 : vector<64x32xi1>, vector<64x32xf32>
    %31 = math.absf %25 : vector<64x32xf32>
    %32 = math.log %31 : vector<64x32xf32>
    %cst_16 = arith.constant 0.333333343 : f32
    %33 = vector.broadcast %cst_16 : f32 to vector<64x32xf32>
    %34 = arith.mulf %32, %33 : vector<64x32xf32>
    %35 = math.exp %34 : vector<64x32xf32>
    %36 = arith.mulf %30, %35 : vector<64x32xf32>
    %37 = tpu.concatenate %14, %21, %36 in 0 : vector<64x32xf32>, vector<64x32xf32>, vector<64x32xf32> -> vector<192x32xf32>
    %c0_17 = arith.constant 0 : index
    %c0_18 = arith.constant 0 : index
    %38 = vector.load %arg5[%c0_17, %c0_18] : memref<32x64xf32, #tpu.memory_space<vmem>>, vector<32x64xf32>
    %cst_19 = arith.constant dense<0.000000e+00> : vector<192x64xf32>
    %39 = tpu.matmul %37, %38, %cst_19 {dimension_numbers = #tpu.dot_dimension_numbers<[1], [0], [0], [1], [0, 0, 1, 1], [], []>} : vector<192x32xf32>, vector<32x64xf32>, vector<192x64xf32> -> vector<192x64xf32>
    %c0_20 = arith.constant 0 : index
    %c0_21 = arith.constant 0 : index
    %c0_22 = arith.constant 0 : index
    %40 = vector.load %arg4[%c0_20, %c0_21, %c0_22] : memref<2x32x32xf32, #tpu.memory_space<vmem>>, vector<1x32x32xf32>
    %41 = vector.shape_cast %40 : vector<1x32x32xf32> to vector<32x32xf32>
    %c0_23 = arith.constant 0 : index
    %c0_24 = arith.constant 0 : index
    %c0_25 = arith.constant 0 : index
    %42 = vector.load %arg6[%c0_23, %c0_24, %c0_25] : memref<2x32x32xf32, #tpu.memory_space<vmem>>, vector<1x32x32xf32>
    %43 = vector.shape_cast %42 : vector<1x32x32xf32> to vector<32x32xf32>
    %44 = vector.extract_strided_slice %37 {offsets = [0, 0], sizes = [64, 32], strides = [1, 1]} : vector<192x32xf32> to vector<64x32xf32>
    %cst_26 = arith.constant 0.899999976 : f32
    %45 = vector.broadcast %cst_26 : f32 to vector<64x32xf32>
    %46 = arith.mulf %45, %44 : vector<64x32xf32>
    %cst_27 = arith.constant 1.000000e-01 : f32
    %47 = vector.broadcast %cst_27 : f32 to vector<64x32xf32>
    %48 = arith.mulf %47, %8 : vector<64x32xf32>
    %49 = arith.addf %46, %48 : vector<64x32xf32>
    %cst_28 = arith.constant dense<0.000000e+00> : vector<64x32xf32>
    %50 = tpu.matmul %49, %41, %cst_28 {dimension_numbers = #tpu.dot_dimension_numbers<[1], [0], [0], [1], [0, 0, 1, 1], [], []>} : vector<64x32xf32>, vector<32x32xf32>, vector<64x32xf32> -> vector<64x32xf32>
    %cst_29 = arith.constant dense<0.000000e+00> : vector<64x32xf32>
    %51 = tpu.matmul %50, %43, %cst_29 {dimension_numbers = #tpu.dot_dimension_numbers<[1], [0], [0], [1], [0, 0, 1, 1], [], []>} : vector<64x32xf32>, vector<32x32xf32>, vector<64x32xf32> -> vector<64x32xf32>
    %52 = vector.extract_strided_slice %39 {offsets = [0, 0], sizes = [192, 32], strides = [1, 1]} : vector<192x64xf32> to vector<192x32xf32>
    %53 = vector.extract_strided_slice %52 {offsets = [0, 0], sizes = [64, 32], strides = [1, 1]} : vector<192x32xf32> to vector<64x32xf32>
    %54 = arith.addf %53, %51 : vector<64x32xf32>
    %cst_30 = arith.constant 0.000000e+00 : f32
    %55 = vector.broadcast %cst_30 : f32 to vector<64x32xf32>
    %56 = arith.cmpf ogt, %54, %55 : vector<64x32xf32>
    %cst_31 = arith.constant 0.000000e+00 : f32
    %57 = vector.broadcast %cst_31 : f32 to vector<64x32xf32>
    %58 = arith.minimumf %54, %57 : vector<64x32xf32>
    %59 = math.exp %58 : vector<64x32xf32>
    %cst_32 = arith.constant 1.000000e+00 : f32
    %60 = vector.broadcast %cst_32 : f32 to vector<64x32xf32>
    %61 = arith.subf %59, %60 : vector<64x32xf32>
    %62 = arith.select %56, %54, %61 : vector<64x32xi1>, vector<64x32xf32>
    %63 = vector.extract_strided_slice %52 {offsets = [64, 0], sizes = [64, 32], strides = [1, 1]} : vector<192x32xf32> to vector<64x32xf32>
    %64 = arith.addf %63, %51 : vector<64x32xf32>
    %cst_33 = arith.constant 0.000000e+00 : f32
    %65 = vector.broadcast %cst_33 : f32 to vector<64x32xf32>
    %66 = arith.cmpf ogt, %64, %65 : vector<64x32xf32>
    %cst_34 = arith.constant 0.000000e+00 : f32
    %67 = vector.broadcast %cst_34 : f32 to vector<64x32xf32>
    %68 = arith.minimumf %64, %67 : vector<64x32xf32>
    %69 = math.exp %68 : vector<64x32xf32>
    %cst_35 = arith.constant 1.000000e+00 : f32
    %70 = vector.broadcast %cst_35 : f32 to vector<64x32xf32>
    %71 = arith.subf %69, %70 : vector<64x32xf32>
    %72 = arith.select %66, %64, %71 : vector<64x32xi1>, vector<64x32xf32>
    %73 = vector.extract_strided_slice %52 {offsets = [128, 0], sizes = [64, 32], strides = [1, 1]} : vector<192x32xf32> to vector<64x32xf32>
    %74 = arith.addf %73, %51 : vector<64x32xf32>
    %cst_36 = arith.constant 0.000000e+00 : f32
    %75 = vector.broadcast %cst_36 : f32 to vector<64x32xf32>
    %76 = arith.cmpf ogt, %74, %75 : vector<64x32xf32>
    %cst_37 = arith.constant 0.000000e+00 : f32
    %77 = vector.broadcast %cst_37 : f32 to vector<64x32xf32>
    %78 = arith.minimumf %74, %77 : vector<64x32xf32>
    %79 = math.exp %78 : vector<64x32xf32>
    %cst_38 = arith.constant 1.000000e+00 : f32
    %80 = vector.broadcast %cst_38 : f32 to vector<64x32xf32>
    %81 = arith.subf %79, %80 : vector<64x32xf32>
    %82 = arith.select %76, %74, %81 : vector<64x32xi1>, vector<64x32xf32>
    %83 = arith.maximumf %62, %72 : vector<64x32xf32>
    %84 = arith.maximumf %83, %82 : vector<64x32xf32>
    %85 = arith.subf %62, %84 : vector<64x32xf32>
    %86 = math.exp %85 : vector<64x32xf32>
    %87 = arith.subf %72, %84 : vector<64x32xf32>
    %88 = math.exp %87 : vector<64x32xf32>
    %89 = arith.subf %82, %84 : vector<64x32xf32>
    %90 = math.exp %89 : vector<64x32xf32>
    %91 = vector.extract_strided_slice %37 {offsets = [0, 0], sizes = [64, 32], strides = [1, 1]} : vector<192x32xf32> to vector<64x32xf32>
    %92 = arith.mulf %91, %86 : vector<64x32xf32>
    %93 = vector.extract_strided_slice %37 {offsets = [64, 0], sizes = [64, 32], strides = [1, 1]} : vector<192x32xf32> to vector<64x32xf32>
    %94 = arith.mulf %93, %88 : vector<64x32xf32>
    %95 = arith.addf %92, %94 : vector<64x32xf32>
    %96 = vector.extract_strided_slice %37 {offsets = [128, 0], sizes = [64, 32], strides = [1, 1]} : vector<192x32xf32> to vector<64x32xf32>
    %97 = arith.mulf %96, %90 : vector<64x32xf32>
    %98 = arith.addf %95, %97 : vector<64x32xf32>
    %99 = arith.addf %86, %88 : vector<64x32xf32>
    %100 = arith.addf %99, %90 : vector<64x32xf32>
    %101 = arith.divf %98, %100 : vector<64x32xf32>
    %cst_39 = arith.constant 0.899999976 : f32
    %102 = vector.broadcast %cst_39 : f32 to vector<64x32xf32>
    %103 = arith.mulf %102, %50 : vector<64x32xf32>
    %cst_40 = arith.constant 1.000000e-01 : f32
    %104 = vector.broadcast %cst_40 : f32 to vector<64x32xf32>
    %105 = arith.mulf %104, %101 : vector<64x32xf32>
    %106 = arith.addf %103, %105 : vector<64x32xf32>
    %cst_41 = arith.constant 0.000000e+00 : f32
    %107 = vector.broadcast %cst_41 : f32 to vector<64x32xf32>
    %108 = arith.maximumf %106, %107 : vector<64x32xf32>
    %c1 = arith.constant 1 : index
    %c0_42 = arith.constant 0 : index
    %c0_43 = arith.constant 0 : index
    %109 = vector.load %arg4[%c1, %c0_42, %c0_43] : memref<2x32x32xf32, #tpu.memory_space<vmem>>, vector<1x32x32xf32>
    %110 = vector.shape_cast %109 : vector<1x32x32xf32> to vector<32x32xf32>
    %c1_44 = arith.constant 1 : index
    %c0_45 = arith.constant 0 : index
    %c0_46 = arith.constant 0 : index
    %111 = vector.load %arg6[%c1_44, %c0_45, %c0_46] : memref<2x32x32xf32, #tpu.memory_space<vmem>>, vector<1x32x32xf32>
    %112 = vector.shape_cast %111 : vector<1x32x32xf32> to vector<32x32xf32>
    %cst_47 = arith.constant dense<0.000000e+00> : vector<64x32xf32>
    %113 = tpu.matmul %1, %108, %cst_47 {dimension_numbers = #tpu.dot_dimension_numbers<[1], [0], [0], [1], [0, 0, 1, 1], [], []>} : vector<64x64xf32>, vector<64x32xf32>, vector<64x32xf32> -> vector<64x32xf32>
    %cst_48 = arith.constant 0.899999976 : f32
    %114 = vector.broadcast %cst_48 : f32 to vector<64x32xf32>
    %115 = arith.mulf %114, %113 : vector<64x32xf32>
    %cst_49 = arith.constant 1.000000e-01 : f32
    %116 = vector.broadcast %cst_49 : f32 to vector<64x32xf32>
    %117 = arith.mulf %116, %8 : vector<64x32xf32>
    %118 = arith.addf %115, %117 : vector<64x32xf32>
    %cst_50 = arith.constant dense<0.000000e+00> : vector<64x32xf32>
    %119 = tpu.matmul %118, %110, %cst_50 {dimension_numbers = #tpu.dot_dimension_numbers<[1], [0], [0], [1], [0, 0, 1, 1], [], []>} : vector<64x32xf32>, vector<32x32xf32>, vector<64x32xf32> -> vector<64x32xf32>
    %cst_51 = arith.constant dense<0.000000e+00> : vector<64x32xf32>
    %120 = tpu.matmul %119, %112, %cst_51 {dimension_numbers = #tpu.dot_dimension_numbers<[1], [0], [0], [1], [0, 0, 1, 1], [], []>} : vector<64x32xf32>, vector<32x32xf32>, vector<64x32xf32> -> vector<64x32xf32>
    %121 = vector.extract_strided_slice %39 {offsets = [0, 32], sizes = [192, 32], strides = [1, 1]} : vector<192x64xf32> to vector<192x32xf32>
    %122 = vector.extract_strided_slice %121 {offsets = [0, 0], sizes = [64, 32], strides = [1, 1]} : vector<192x32xf32> to vector<64x32xf32>
    %123 = arith.addf %122, %120 : vector<64x32xf32>
    %cst_52 = arith.constant 0.000000e+00 : f32
    %124 = vector.broadcast %cst_52 : f32 to vector<64x32xf32>
    %125 = arith.cmpf ogt, %123, %124 : vector<64x32xf32>
    %cst_53 = arith.constant 0.000000e+00 : f32
    %126 = vector.broadcast %cst_53 : f32 to vector<64x32xf32>
    %127 = arith.minimumf %123, %126 : vector<64x32xf32>
    %128 = math.exp %127 : vector<64x32xf32>
    %cst_54 = arith.constant 1.000000e+00 : f32
    %129 = vector.broadcast %cst_54 : f32 to vector<64x32xf32>
    %130 = arith.subf %128, %129 : vector<64x32xf32>
    %131 = arith.select %125, %123, %130 : vector<64x32xi1>, vector<64x32xf32>
    %132 = vector.extract_strided_slice %121 {offsets = [64, 0], sizes = [64, 32], strides = [1, 1]} : vector<192x32xf32> to vector<64x32xf32>
    %133 = arith.addf %132, %120 : vector<64x32xf32>
    %cst_55 = arith.constant 0.000000e+00 : f32
    %134 = vector.broadcast %cst_55 : f32 to vector<64x32xf32>
    %135 = arith.cmpf ogt, %133, %134 : vector<64x32xf32>
    %cst_56 = arith.constant 0.000000e+00 : f32
    %136 = vector.broadcast %cst_56 : f32 to vector<64x32xf32>
    %137 = arith.minimumf %133, %136 : vector<64x32xf32>
    %138 = math.exp %137 : vector<64x32xf32>
    %cst_57 = arith.constant 1.000000e+00 : f32
    %139 = vector.broadcast %cst_57 : f32 to vector<64x32xf32>
    %140 = arith.subf %138, %139 : vector<64x32xf32>
    %141 = arith.select %135, %133, %140 : vector<64x32xi1>, vector<64x32xf32>
    %142 = vector.extract_strided_slice %121 {offsets = [128, 0], sizes = [64, 32], strides = [1, 1]} : vector<192x32xf32> to vector<64x32xf32>
    %143 = arith.addf %142, %120 : vector<64x32xf32>
    %cst_58 = arith.constant 0.000000e+00 : f32
    %144 = vector.broadcast %cst_58 : f32 to vector<64x32xf32>
    %145 = arith.cmpf ogt, %143, %144 : vector<64x32xf32>
    %cst_59 = arith.constant 0.000000e+00 : f32
    %146 = vector.broadcast %cst_59 : f32 to vector<64x32xf32>
    %147 = arith.minimumf %143, %146 : vector<64x32xf32>
    %148 = math.exp %147 : vector<64x32xf32>
    %cst_60 = arith.constant 1.000000e+00 : f32
    %149 = vector.broadcast %cst_60 : f32 to vector<64x32xf32>
    %150 = arith.subf %148, %149 : vector<64x32xf32>
    %151 = arith.select %145, %143, %150 : vector<64x32xi1>, vector<64x32xf32>
    %152 = arith.maximumf %131, %141 : vector<64x32xf32>
    %153 = arith.maximumf %152, %151 : vector<64x32xf32>
    %154 = arith.subf %131, %153 : vector<64x32xf32>
    %155 = math.exp %154 : vector<64x32xf32>
    %156 = arith.subf %141, %153 : vector<64x32xf32>
    %157 = math.exp %156 : vector<64x32xf32>
    %158 = arith.subf %151, %153 : vector<64x32xf32>
    %159 = math.exp %158 : vector<64x32xf32>
    %160 = vector.extract_strided_slice %37 {offsets = [0, 0], sizes = [64, 32], strides = [1, 1]} : vector<192x32xf32> to vector<64x32xf32>
    %161 = arith.mulf %160, %155 : vector<64x32xf32>
    %162 = vector.extract_strided_slice %37 {offsets = [64, 0], sizes = [64, 32], strides = [1, 1]} : vector<192x32xf32> to vector<64x32xf32>
    %163 = arith.mulf %162, %157 : vector<64x32xf32>
    %164 = arith.addf %161, %163 : vector<64x32xf32>
    %165 = vector.extract_strided_slice %37 {offsets = [128, 0], sizes = [64, 32], strides = [1, 1]} : vector<192x32xf32> to vector<64x32xf32>
    %166 = arith.mulf %165, %159 : vector<64x32xf32>
    %167 = arith.addf %164, %166 : vector<64x32xf32>
    %168 = arith.addf %155, %157 : vector<64x32xf32>
    %169 = arith.addf %168, %159 : vector<64x32xf32>
    %170 = arith.divf %167, %169 : vector<64x32xf32>
    %cst_61 = arith.constant 0.899999976 : f32
    %171 = vector.broadcast %cst_61 : f32 to vector<64x32xf32>
    %172 = arith.mulf %171, %119 : vector<64x32xf32>
    %cst_62 = arith.constant 1.000000e-01 : f32
    %173 = vector.broadcast %cst_62 : f32 to vector<64x32xf32>
    %174 = arith.mulf %173, %170 : vector<64x32xf32>
    %175 = arith.addf %172, %174 : vector<64x32xf32>
    %cst_63 = arith.constant 0.000000e+00 : f32
    %176 = vector.broadcast %cst_63 : f32 to vector<64x32xf32>
    %177 = arith.maximumf %175, %176 : vector<64x32xf32>
    %c0_64 = arith.constant 0 : index
    %c0_65 = arith.constant 0 : index
    %178 = vector.load %arg7[%c0_64, %c0_65] : memref<32x8xf32, #tpu.memory_space<vmem>>, vector<32x8xf32>
    %cst_66 = arith.constant dense<0.000000e+00> : vector<64x8xf32>
    %179 = tpu.matmul %177, %178, %cst_66 {dimension_numbers = #tpu.dot_dimension_numbers<[1], [0], [0], [1], [0, 0, 1, 1], [], []>} : vector<64x32xf32>, vector<32x8xf32>, vector<64x8xf32> -> vector<64x8xf32>
    %c0_67 = arith.constant 0 : index
    %c0_68 = arith.constant 0 : index
    %180 = vector.load %arg8[%c0_67, %c0_68] : memref<1x8xf32, #tpu.memory_space<vmem>>, vector<1x8xf32>
    %181 = vector.broadcast %180 : vector<1x8xf32> to vector<64x8xf32>
    %182 = arith.addf %179, %181 : vector<64x8xf32>
    %cst_69 = arith.constant dense<0xFF800000> : vector<64xf32>
    %183 = vector.multi_reduction <maximumf>, %182, %cst_69 [1] : vector<64x8xf32> to vector<64xf32>
    %184 = vector.shape_cast %183 : vector<64xf32> to vector<64x1xf32>
    %185 = vector.broadcast %184 : vector<64x1xf32> to vector<64x8xf32>
    %186 = arith.subf %182, %185 : vector<64x8xf32>
    %187 = math.exp %186 : vector<64x8xf32>
    %cst_70 = arith.constant dense<0.000000e+00> : vector<64xf32>
    %188 = vector.multi_reduction <add>, %187, %cst_70 [1] : vector<64x8xf32> to vector<64xf32>
    %189 = vector.shape_cast %188 : vector<64xf32> to vector<64x1xf32>
    %190 = math.log %189 : vector<64x1xf32>
    %191 = vector.broadcast %190 : vector<64x1xf32> to vector<64x8xf32>
    %192 = arith.subf %186, %191 : vector<64x8xf32>
    %c0_71 = arith.constant 0 : index
    %c0_72 = arith.constant 0 : index
    %193 = vector.load %arg9[%c0_71, %c0_72] : memref<64x8xf32, #tpu.memory_space<vmem>>, vector<64x8xf32>
    tpu.vector_store %arg9[%c0_71, %c0_72], %192 {strides = array<i32>} : memref<64x8xf32, #tpu.memory_space<vmem>>, vector<64x8xf32>,
    return
  }
}

</mosaic_0001>

<llo_original>
// kernel: tpu_custom_call.1
$region0: #{tpu_custom_call.1}
  #allocation0 [shape = 'u32[]', space=smem, size = 0x4, offset = 0x4, fixed_abs, tag = 'smem constant byte address 0x4 - core index']
  #allocation1 [shape = 'u32[144,128]{1,0:T(1,128)}', space=vmem, size = 0x12000, scoped, tag = 'internal scratch']
  %s0 = inlined_call_operand.vmem [shape: f32[64,16], index: 0, kind: input, shape index: {}]
  %s1 = inlined_call_operand.vmem [shape: f32[64,64], index: 1, kind: input, shape index: {}]
  %s2 = inlined_call_operand.hbm [shape: f32[16,32], index: 2, kind: input, shape index: {}]
  %s3 = inlined_call_operand.vmem [shape: f32[1,32], index: 3, kind: input, shape index: {}]
  %s4 = inlined_call_operand.vmem [shape: f32[2,32,32], index: 4, kind: input, shape index: {}]
  %s5 = inlined_call_operand.hbm [shape: f32[32,64], index: 5, kind: input, shape index: {}]
  %s6 = inlined_call_operand.hbm [shape: f32[2,32,32], index: 6, kind: input, shape index: {}]
  %s7 = inlined_call_operand.vmem [shape: f32[32,8], index: 7, kind: input, shape index: {}]
  %s8 = inlined_call_operand.vmem [shape: f32[1,8], index: 8, kind: input, shape index: {}]
  %s9 = inlined_call_operand.vmem [shape: f32[64,8], index: 9, kind: output, shape index: {}]
  %s10 = sld [smem:[#allocation0]]
  $region58: #{tpu_custom_call.1} parent=0
    _
  %s12 = ssub.s32 1, %s10
  %s13 = scalar_select 0, %s12, %s10
  $region1: #{tpu_custom_call.1} parent=0
    #allocation2 [shape = 'u8[8192]{0}', space=vmem, size = 0x2000, scoped, tag = 'input window, operand 2, single buffered']
    #allocation3 [shape = 's32[1]{0}', space=sflag, size = 0x4, scoped, tag = 'scoped memory for tpu_custom_call.1']
    #allocation4 [shape = 'u8[16384]{0}', space=vmem, size = 0x4000, scoped, tag = 'input window, operand 5, single buffered']
    #allocation5 [shape = 's32[1]{0}', space=sflag, size = 0x4, scoped, tag = 'scoped memory for tpu_custom_call.1']
    #allocation6 [shape = 'u8[32768]{0}', space=vmem, size = 0x8000, scoped, tag = 'input window, operand 6, single buffered']
    %14 = vsyncpa [#allocation3], 0
    %15 = vsyncpa [#allocation5], 0
    // Predicated region
    $region2: #{tpu_custom_call.1} parent=1 // pred_check
      _
    $region3: #{tpu_custom_call.1} parent=1 // pred_check_branch
      %17 = sbr.rel (0) target = $region5
    $region4: #{tpu_custom_call.1} parent=1 // pred_region
      _
    $region5: #{tpu_custom_call.1} parent=1 // pred_fallthru
      _
    // Predicated region
    $region6: #{tpu_custom_call.1} parent=1 // pred_check
      _
    $region7: #{tpu_custom_call.1} parent=1 // pred_check_branch
      %19 = sbr.rel (0) target = $region9
    $region8: #{tpu_custom_call.1} parent=1 // pred_region
      _
    $region9: #{tpu_custom_call.1} parent=1 // pred_fallthru
      _
    // Predicated region
    $region10: #{tpu_custom_call.1} parent=1 // pred_check
      _
    $region11: #{tpu_custom_call.1} parent=1 // pred_check_branch
      %21 = sbr.rel (0) target = $region13
    $region12: #{tpu_custom_call.1} parent=1 // pred_region
      %s23 = ssub.s32 256, 256
      %24 = vsyncadd [#allocation3], %s23
      %s25 = sshll.u32 [#allocation2], 4
      %s26 = int_to_ptr.vmem [resolvable:$true] %s25
      %31 = dma.hbm_to_vmem [thread:$0]  %s2, 256, %s26, [#allocation3], 128, 128, 8
    $region13: #{tpu_custom_call.1} parent=1 // pred_fallthru
      _
    // Predicated region
    $region14: #{tpu_custom_call.1} parent=1 // pred_check
      _
    $region15: #{tpu_custom_call.1} parent=1 // pred_check_branch
      %33 = sbr.rel (0) target = $region17
    $region16: #{tpu_custom_call.1} parent=1 // pred_region
      _
    $region17: #{tpu_custom_call.1} parent=1 // pred_fallthru
      _
    // Predicated region
    $region18: #{tpu_custom_call.1} parent=1 // pred_check
      _
    $region19: #{tpu_custom_call.1} parent=1 // pred_check_branch
      %35 = sbr.rel (0) target = $region21
    $region20: #{tpu_custom_call.1} parent=1 // pred_region
      _
    $region21: #{tpu_custom_call.1} parent=1 // pred_fallthru
      _
    // Predicated region
    $region22: #{tpu_custom_call.1} parent=1 // pred_check
      _
    $region23: #{tpu_custom_call.1} parent=1 // pred_check_branch
      %37 = sbr.rel (0) target = $region25
    $region24: #{tpu_custom_call.1} parent=1 // pred_region
      %s39 = ssub.s32 512, 512
      %40 = vsyncadd [#allocation5], %s39
      %s41 = sshll.u32 [#allocation4], 4
      %s42 = int_to_ptr.vmem [resolvable:$true] %s41
      %47 = dma.hbm_to_vmem [thread:$0]  %s5, 512, %s42, [#allocation5], 128, 128, 8
    $region25: #{tpu_custom_call.1} parent=1 // pred_fallthru
      _
    // Predicated region
    $region26: #{tpu_custom_call.1} parent=1 // pred_check
      _
    $region27: #{tpu_custom_call.1} parent=1 // pred_check_branch
      %49 = sbr.rel (0) target = $region29
    $region28: #{tpu_custom_call.1} parent=1 // pred_region
      %s51 = ssub.s32 1024, 1024
      %52 = vsyncadd [#allocation5], %s51
      %s53 = sshll.u32 [#allocation6], 4
      %s54 = int_to_ptr.vmem [resolvable:$true] %s53
      %59 = dma.hbm_to_vmem [thread:$0]  %s6, 1024, %s54, [#allocation5], 128, 128, 8
    $region29: #{tpu_custom_call.1} parent=1 // pred_fallthru
      _
    // Predicated region
    $region30: #{tpu_custom_call.1} parent=1 // pred_check
      _
    $region31: #{tpu_custom_call.1} parent=1 // pred_check_branch
      %61 = sbr.rel (0) target = $region33
    $region32: #{tpu_custom_call.1} parent=1 // pred_region
      _
    $region33: #{tpu_custom_call.1} parent=1 // pred_fallthru
      _
    // Predicated region
    $region34: #{tpu_custom_call.1} parent=1 // pred_check
      _
    $region35: #{tpu_custom_call.1} parent=1 // pred_check_branch
      %63 = sbr.rel (0) target = $region37
    $region36: #{tpu_custom_call.1} parent=1 // pred_region
      _
    $region37: #{tpu_custom_call.1} parent=1 // pred_fallthru
      _
    // Predicated region
    $region38: #{tpu_custom_call.1} parent=1 // pred_check
      _
    $region39: #{tpu_custom_call.1} parent=1 // pred_check_branch
      %65 = sbr.rel (0) target = $region41
    $region40: #{tpu_custom_call.1} parent=1 // pred_region
      %66 = dma.done [#allocation3], 256
    $region41: #{tpu_custom_call.1} parent=1 // pred_fallthru
      _
    // Predicated region
    $region42: #{tpu_custom_call.1} parent=1 // pred_check
      _
    $region43: #{tpu_custom_call.1} parent=1 // pred_check_branch
      %68 = sbr.rel (0) target = $region45
    $region44: #{tpu_custom_call.1} parent=1 // pred_region
      %69 = dma.done [#allocation5], 512
    $region45: #{tpu_custom_call.1} parent=1 // pred_fallthru
      _
    // Predicated region
    $region46: #{tpu_custom_call.1} parent=1 // pred_check
      _
    $region47: #{tpu_custom_call.1} parent=1 // pred_check_branch
      %71 = sbr.rel (0) target = $region49
    $region48: #{tpu_custom_call.1} parent=1 // pred_region
      %72 = dma.done [#allocation5], 1024
    $region49: #{tpu_custom_call.1} parent=1 // pred_fallthru
      _
    %v73 = vld [vmem:[%s0] sm:$0xff]
    %v74 = vld [vmem:[%s0 + $0x8] sm:$0xff]
    %v75 = vld [vmem:[%s0 + $0x10] sm:$0xff]
    %v76 = vld [vmem:[%s0 + $0x18] sm:$0xff]
    %v77 = vld [vmem:[%s0 + $0x20] sm:$0xff]
    %v78 = vld [vmem:[%s0 + $0x28] sm:$0xff]
    %v79 = vld [vmem:[%s0 + $0x30] sm:$0xff]
    %v80 = vld [vmem:[%s0 + $0x38] sm:$0xff]
    %v81 = vld [vmem:[%s1] sm:$0xff]
    %v82 = vld [vmem:[%s1 + $0x8] sm:$0xff]
    %v83 = vld [vmem:[%s1 + $0x10] sm:$0xff]
    %v84 = vld [vmem:[%s1 + $0x18] sm:$0xff]
    %v85 = vld [vmem:[%s1 + $0x20] sm:$0xff]
    %v86 = vld [vmem:[%s1 + $0x28] sm:$0xff]
    %v87 = vld [vmem:[%s1 + $0x30] sm:$0xff]
    %v88 = vld [vmem:[%s1 + $0x38] sm:$0xff]
    %v89 = vld [vmem:[#allocation2] sm:$0xff]
    %v90 = vld [vmem:[#allocation2 + $0x8] sm:$0xff]
    %v91 = vld [vmem:[%s3] sm:$0x1]
    %v93 = vlaneseq
    %v94 = vshrl.u32 %v93, 7
    %v95 = vsub.s32 0, %v94
    %v96 = vrot.slane %v91, %v95
    %vm98 = vcmask 130048
    %v100 = vsel %vm98, %v73, 0
    %v103 = vsel %vm98, %v74, 0
    %v106 = vsel %vm98, %v75, 0
    %v109 = vsel %vm98, %v76, 0
    %v112 = vsel %vm98, %v77, 0
    %v115 = vsel %vm98, %v78, 0
    %v118 = vsel %vm98, %v79, 0
    %v121 = vsel %vm98, %v80, 0
    %123 = vmatprep.subr.mxu0 0.0
    %124 = vmatpush1.msra.mxu0 %v89
    %125 = vmatprep.subr.mxu0 0.0
    %126 = vmatpush1.msra.mxu0 %v90
    %127 = vmatprep.subr.mxu0 0.0
    %128 = vmatpush1.msra.mxu0 0.0
    %129 = vmatprep.subr.mxu0 0.0
    %130 = vmatpush1.msra.mxu0 0.0
    %131 = vmatprep.subr.mxu0 0.0
    %132 = vmatpush1.msra.mxu0 0.0
    %133 = vmatprep.subr.mxu0 0.0
    %134 = vmatpush1.msra.mxu0 0.0
    %135 = vmatprep.subr.mxu0 0.0
    %136 = vmatpush1.msra.mxu0 0.0
    %137 = vmatprep.subr.mxu0 0.0
    %138 = vmatpush1.msra.mxu0 0.0
    %139 = vmatprep.subr.mxu0 0.0
    %140 = vmatpush1.msra.mxu0 0.0
    %141 = vmatprep.subr.mxu0 0.0
    %142 = vmatpush1.msra.mxu0 0.0
    %143 = vmatprep.subr.mxu0 0.0
    %144 = vmatpush1.msra.mxu0 0.0
    %145 = vmatprep.subr.mxu0 0.0
    %146 = vmatpush1.msra.mxu0 0.0
    %147 = vmatprep.subr.mxu0 0.0
    %148 = vmatpush1.msra.mxu0 0.0
    %149 = vmatprep.subr.mxu0 0.0
    %150 = vmatpush1.msra.mxu0 0.0
    %151 = vmatprep.subr.mxu0 0.0
    %152 = vmatpush1.msra.mxu0 0.0
    %153 = vmatprep.subr.mxu0 0.0
    %154 = vmatpush1.msra.mxu0 0.0
    %155 = vmatprep.subr.mxu0 0.0
    %156 = vmatpush1.msra.mxu0 0.0
    %157 = vmatprep.subr.mxu0 0.0
    %158 = vmatpush1.msra.mxu0 0.0
    %159 = vmatprep.subr.mxu0 0.0
    %160 = vmatpush1.msra.mxu0 0.0
    %161 = vmatprep.subr.mxu0 0.0
    %162 = vmatpush1.msra.mxu0 0.0
    %163 = vmatprep.subr.mxu0 0.0
    %164 = vmatpush1.msra.mxu0 0.0
    %165 = vmatprep.subr.mxu0 0.0
    %166 = vmatpush1.msra.mxu0 0.0
    %167 = vmatprep.subr.mxu0 0.0
    %168 = vmatpush1.msra.mxu0 0.0
    %169 = vmatprep.subr.mxu0 0.0
    %170 = vmatpush1.msra.mxu0 0.0
    %171 = vmatprep.subr.mxu0 0.0
    %172 = vmatpush1.msra.mxu0 0.0
    %173 = vmatprep.subr.mxu0 0.0
    %174 = vmatpush1.msra.mxu0 0.0
    %175 = vmatprep.subr.mxu0 0.0
    %176 = vmatpush1.msra.mxu0 0.0
    %177 = vmatprep.subr.mxu0 0.0
    %178 = vmatpush1.msra.mxu0 0.0
    %179 = vmatprep.subr.mxu0 0.0
    %180 = vmatpush1.msra.mxu0 0.0
    %181 = vmatprep.subr.mxu0 0.0
    %182 = vmatpush1.msra.mxu0 0.0
    %183 = vmatprep.subr.mxu0 0.0
    %184 = vmatpush1.msra.mxu0 0.0
    %185 = vmatprep.subr.mxu0 0.0
    %186 = vmatpush1.msra.mxu0 0.0
    %187 = vmatprep.mubr.f32.mxu0 0.0
    %188 = vmatmul.mubr.f32.gmra.mrb[0].mxu0 %v100
    %v189 = vpop.f32.mrb[0].mxu0
    %v190 = vadd.f32 %v96, %v189
    %v191 = vpop.f32.mrb[0].mxu0
    %192 = vmatprep.mubr.f32.mxu0 0.0
    %193 = vmatmul.mubr.f32.gmra.mrb[0].mxu0 %v103
    %v194 = vpop.f32.mrb[0].mxu0
    %v195 = vadd.f32 %v96, %v194
    %v196 = vpop.f32.mrb[0].mxu0
    %197 = vmatprep.mubr.f32.mxu0 0.0
    %198 = vmatmul.mubr.f32.gmra.mrb[0].mxu0 %v106
    %v199 = vpop.f32.mrb[0].mxu0
    %v200 = vadd.f32 %v96, %v199
    %v201 = vpop.f32.mrb[0].mxu0
    %202 = vmatprep.mubr.f32.mxu0 0.0
    %203 = vmatmul.mubr.f32.gmra.mrb[0].mxu0 %v109
    %v204 = vpop.f32.mrb[0].mxu0
    %v205 = vadd.f32 %v96, %v204
    %v206 = vpop.f32.mrb[0].mxu0
    %207 = vmatprep.mubr.f32.mxu0 0.0
    %208 = vmatmul.mubr.f32.gmra.mrb[0].mxu0 %v112
    %v209 = vpop.f32.mrb[0].mxu0
    %v210 = vadd.f32 %v96, %v209
    %v211 = vpop.f32.mrb[0].mxu0
    %212 = vmatprep.mubr.f32.mxu0 0.0
    %213 = vmatmul.mubr.f32.gmra.mrb[0].mxu0 %v115
    %v214 = vpop.f32.mrb[0].mxu0
    %v215 = vadd.f32 %v96, %v214
    %v216 = vpop.f32.mrb[0].mxu0
    %217 = vmatprep.mubr.f32.mxu0 0.0
    %218 = vmatmul.mubr.f32.gmra.mrb[0].mxu0 %v118
    %v219 = vpop.f32.mrb[0].mxu0
    %v220 = vadd.f32 %v96, %v219
    %v221 = vpop.f32.mrb[0].mxu0
    %222 = vmatprep.mubr.f32.mxu0 0.0
    %223 = vmatmul.mubr.f32.gmra.mrb[0].mxu0 %v121
    %v224 = vpop.f32.mrb[0].mxu0
    %v225 = vadd.f32 %v96, %v224
    %v226 = vpop.f32.mrb[0].mxu0
    %227 = vdwg.mxu0
    %v228 = vmax.f32 %v190, 0.0
    %v229 = vmax.f32 %v195, 0.0
    %v230 = vmax.f32 %v200, 0.0
    %v231 = vmax.f32 %v205, 0.0
    %v232 = vmax.f32 %v210, 0.0
    %v233 = vmax.f32 %v215, 0.0
    %v234 = vmax.f32 %v220, 0.0
    %v235 = vmax.f32 %v225, 0.0
    %v236 = vmul.f32 %v228, %v228
    %v237 = vmul.f32 %v229, %v229
    %v238 = vmul.f32 %v230, %v230
    %v239 = vmul.f32 %v231, %v231
    %v240 = vmul.f32 %v232, %v232
    %v241 = vmul.f32 %v233, %v233
    %v242 = vmul.f32 %v234, %v234
    %v243 = vmul.f32 %v235, %v235
    %v244 = vmul.f32 %v236, %v228
    %v245 = vmul.f32 %v237, %v229
    %v246 = vmul.f32 %v238, %v230
    %v247 = vmul.f32 %v239, %v231
    %v248 = vmul.f32 %v240, %v232
    %v249 = vmul.f32 %v241, %v233
    %v250 = vmul.f32 %v242, %v234
    %v251 = vmul.f32 %v243, %v235
    %260 = vrot.lane.b32.xlu0 %v236, 32
    %v261 = vpop.permute.xlu0 %260
    %262 = vrot.lane.b32.xlu0 %v237, 32
    %v263 = vpop.permute.xlu0 %262
    %264 = vrot.lane.b32.xlu0 %v238, 32
    %v265 = vpop.permute.xlu0 %264
    %266 = vrot.lane.b32.xlu0 %v239, 32
    %v267 = vpop.permute.xlu0 %266
    %268 = vrot.lane.b32.xlu0 %v240, 32
    %v269 = vpop.permute.xlu0 %268
    %270 = vrot.lane.b32.xlu0 %v241, 32
    %v271 = vpop.permute.xlu0 %270
    %272 = vrot.lane.b32.xlu0 %v242, 32
    %v273 = vpop.permute.xlu0 %272
    %274 = vrot.lane.b32.xlu0 %v243, 32
    %v275 = vpop.permute.xlu0 %274
    %292 = vrot.lane.b32.xlu0 %v244, 64
    %v293 = vpop.permute.xlu0 %292
    %294 = vrot.lane.b32.xlu0 %v245, 64
    %v295 = vpop.permute.xlu0 %294
    %296 = vrot.lane.b32.xlu0 %v246, 64
    %v297 = vpop.permute.xlu0 %296
    %298 = vrot.lane.b32.xlu0 %v247, 64
    %v299 = vpop.permute.xlu0 %298
    %300 = vrot.lane.b32.xlu0 %v248, 64
    %v301 = vpop.permute.xlu0 %300
    %302 = vrot.lane.b32.xlu0 %v249, 64
    %v303 = vpop.permute.xlu0 %302
    %304 = vrot.lane.b32.xlu0 %v250, 64
    %v305 = vpop.permute.xlu0 %304
    %306 = vrot.lane.b32.xlu0 %v251, 64
    %v307 = vpop.permute.xlu0 %306
    %vm316 = vcmask 261120
    %v317 = vsel %vm316, %v228, %v261
    %v318 = vsel %vm316, %v229, %v263
    %v319 = vsel %vm316, %v230, %v265
    %v320 = vsel %vm316, %v231, %v267
    %v321 = vsel %vm316, %v232, %v269
    %v322 = vsel %vm316, %v233, %v271
    %v323 = vsel %vm316, %v234, %v273
    %v324 = vsel %vm316, %v235, %v275
    %vm325 = vcmask 523264
    %v326 = vsel %vm325, %v317, %v293
    %v327 = vsel %vm325, %v318, %v295
    %v328 = vsel %vm325, %v319, %v297
    %v329 = vsel %vm325, %v320, %v299
    %v330 = vsel %vm325, %v321, %v301
    %v331 = vsel %vm325, %v322, %v303
    %v332 = vsel %vm325, %v323, %v305
    %v333 = vsel %vm325, %v324, %v307
    %v335 = vsel %vm325, %v81, 0
    %v338 = vsel %vm325, %v82, 0
    %v341 = vsel %vm325, %v83, 0
    %v344 = vsel %vm325, %v84, 0
    %v347 = vsel %vm325, %v85, 0
    %v350 = vsel %vm325, %v86, 0
    %v353 = vsel %vm325, %v87, 0
    %v356 = vsel %vm325, %v88, 0
    %358 = vmatprep.subr.mxu0 0.0
    %359 = vmatpush1.msra.mxu0 %v326
    %360 = vmatprep.subr.mxu0 0.0
    %361 = vmatpush1.msra.mxu0 %v327
    %362 = vmatprep.subr.mxu0 0.0
    %363 = vmatpush1.msra.mxu0 %v328
    %364 = vmatprep.subr.mxu0 0.0
    %365 = vmatpush1.msra.mxu0 %v329
    %366 = vmatprep.subr.mxu0 0.0
    %367 = vmatpush1.msra.mxu0 %v330
    %368 = vmatprep.subr.mxu0 0.0
    %369 = vmatpush1.msra.mxu0 %v331
    %370 = vmatprep.subr.mxu0 0.0
    %371 = vmatpush1.msra.mxu0 %v332
    %372 = vmatprep.subr.mxu0 0.0
    %373 = vmatpush1.msra.mxu0 %v333
    %374 = vmatprep.subr.mxu0 0.0
    %375 = vmatpush1.msra.mxu0 0.0
    %376 = vmatprep.subr.mxu0 0.0
    %377 = vmatpush1.msra.mxu0 0.0
    %378 = vmatprep.subr.mxu0 0.0
    %379 = vmatpush1.msra.mxu0 0.0
    %380 = vmatprep.subr.mxu0 0.0
    %381 = vmatpush1.msra.mxu0 0.0
    %382 = vmatprep.subr.mxu0 0.0
    %383 = vmatpush1.msra.mxu0 0.0
    %384 = vmatprep.subr.mxu0 0.0
    %385 = vmatpush1.msra.mxu0 0.0
    %386 = vmatprep.subr.mxu0 0.0
    %387 = vmatpush1.msra.mxu0 0.0
    %388 = vmatprep.subr.mxu0 0.0
    %389 = vmatpush1.msra.mxu0 0.0
    %390 = vmatprep.subr.mxu0 0.0
    %391 = vmatpush1.msra.mxu0 0.0
    %392 = vmatprep.subr.mxu0 0.0
    %393 = vmatpush1.msra.mxu0 0.0
    %394 = vmatprep.subr.mxu0 0.0
    %395 = vmatpush1.msra.mxu0 0.0
    %396 = vmatprep.subr.mxu0 0.0
    %397 = vmatpush1.msra.mxu0 0.0
    %398 = vmatprep.subr.mxu0 0.0
    %399 = vmatpush1.msra.mxu0 0.0
    %400 = vmatprep.subr.mxu0 0.0
    %401 = vmatpush1.msra.mxu0 0.0
    %402 = vmatprep.subr.mxu0 0.0
    %403 = vmatpush1.msra.mxu0 0.0
    %404 = vmatprep.subr.mxu0 0.0
    %405 = vmatpush1.msra.mxu0 0.0
    %406 = vmatprep.subr.mxu0 0.0
    %407 = vmatpush1.msra.mxu0 0.0
    %408 = vmatprep.subr.mxu0 0.0
    %409 = vmatpush1.msra.mxu0 0.0
    %410 = vmatprep.subr.mxu0 0.0
    %411 = vmatpush1.msra.mxu0 0.0
    %412 = vmatprep.subr.mxu0 0.0
    %413 = vmatpush1.msra.mxu0 0.0
    %414 = vmatprep.subr.mxu0 0.0
    %415 = vmatpush1.msra.mxu0 0.0
    %416 = vmatprep.subr.mxu0 0.0
    %417 = vmatpush1.msra.mxu0 0.0
    %418 = vmatprep.subr.mxu0 0.0
    %419 = vmatpush1.msra.mxu0 0.0
    %420 = vmatprep.subr.mxu0 0.0
    %421 = vmatpush1.msra.mxu0 0.0
    %422 = vmatprep.mubr.f32.mxu0 0.0
    %423 = vmatmul.mubr.f32.gmra.mrb[0].mxu0 %v335
    %v424 = vpop.f32.mrb[0].mxu0
    %v425 = vadd.f32 0.0, %v424
    %v426 = vpop.f32.mrb[0].mxu0
    %427 = vmatprep.mubr.f32.mxu0 0.0
    %428 = vmatmul.mubr.f32.gmra.mrb[0].mxu0 %v338
    %v429 = vpop.f32.mrb[0].mxu0
    %v430 = vadd.f32 0.0, %v429
    %v431 = vpop.f32.mrb[0].mxu0
    %432 = vmatprep.mubr.f32.mxu0 0.0
    %433 = vmatmul.mubr.f32.gmra.mrb[0].mxu0 %v341
    %v434 = vpop.f32.mrb[0].mxu0
    %v435 = vadd.f32 0.0, %v434
    %v436 = vpop.f32.mrb[0].mxu0
    %437 = vmatprep.mubr.f32.mxu0 0.0
    %438 = vmatmul.mubr.f32.gmra.mrb[0].mxu0 %v344
    %v439 = vpop.f32.mrb[0].mxu0
    %v440 = vadd.f32 0.0, %v439
    %v441 = vpop.f32.mrb[0].mxu0
    %442 = vmatprep.mubr.f32.mxu0 0.0
    %443 = vmatmul.mubr.f32.gmra.mrb[0].mxu0 %v347
    %v444 = vpop.f32.mrb[0].mxu0
    %v445 = vadd.f32 0.0, %v444
    %v446 = vpop.f32.mrb[0].mxu0
    %447 = vmatprep.mubr.f32.mxu0 0.0
    %448 = vmatmul.mubr.f32.gmra.mrb[0].mxu0 %v350
    %v449 = vpop.f32.mrb[0].mxu0
    %v450 = vadd.f32 0.0, %v449
    %v451 = vpop.f32.mrb[0].mxu0
    %452 = vmatprep.mubr.f32.mxu0 0.0
    %453 = vmatmul.mubr.f32.gmra.mrb[0].mxu0 %v353
    %v454 = vpop.f32.mrb[0].mxu0
    %v455 = vadd.f32 0.0, %v454
    %v456 = vpop.f32.mrb[0].mxu0
    %457 = vmatprep.mubr.f32.mxu0 0.0
    %458 = vmatmul.mubr.f32.gmra.mrb[0].mxu0 %v356
    %v459 = vpop.f32.mrb[0].mxu0
    %v460 = vadd.f32 0.0, %v459
    %v461 = vpop.f32.mrb[0].mxu0
    %462 = vdwg.mxu0
    %vm463 = vcmp.eq.f32.partialorder %v425, 0.0
    %vm464 = vcmp.eq.f32.partialorder %v430, 0.0
    %vm465 = vcmp.eq.f32.partialorder %v435, 0.0
    %vm466 = vcmp.eq.f32.partialorder %v440, 0.0
    %vm467 = vcmp.eq.f32.partialorder %v445, 0.0
    %vm468 = vcmp.eq.f32.partialorder %v450, 0.0
    %vm469 = vcmp.eq.f32.partialorder %v455, 0.0
    %vm470 = vcmp.eq.f32.partialorder %v460, 0.0
    %v471 = vsel %vm463, 1e-16, %v425
    %v472 = vsel %vm464, 1e-16, %v430
    %v473 = vsel %vm465, 1e-16, %v435
    %v474 = vsel %vm466, 1e-16, %v440
    %v475 = vsel %vm467, 1e-16, %v445
    %v476 = vsel %vm468, 1e-16, %v450
    %v477 = vsel %vm469, 1e-16, %v455
    %v478 = vsel %vm470, 1e-16, %v460
    %v479 = vrsqrt.pop %v471
    %v480 = vmul.f32 %v471, %v479
    %vm481 = vcmp.eq.f32.partialorder %v471, inf
    %v482 = vsel %vm481, %v471, %v480
    %vm483 = vcmp.eq.f32.partialorder %v471, 0.0
    %v484 = vand.u32 %v471, 2147483648
    %v485 = vsel %vm483, %v484, %v482
    %v486 = vrsqrt.pop %v472
    %v487 = vmul.f32 %v472, %v486
    %vm488 = vcmp.eq.f32.partialorder %v472, inf
    %v489 = vsel %vm488, %v472, %v487
    %vm490 = vcmp.eq.f32.partialorder %v472, 0.0
    %v491 = vand.u32 %v472, 2147483648
    %v492 = vsel %vm490, %v491, %v489
    %v493 = vrsqrt.pop %v473
    %v494 = vmul.f32 %v473, %v493
    %vm495 = vcmp.eq.f32.partialorder %v473, inf
    %v496 = vsel %vm495, %v473, %v494
    %vm497 = vcmp.eq.f32.partialorder %v473, 0.0
    %v498 = vand.u32 %v473, 2147483648
    %v499 = vsel %vm497, %v498, %v496
    %v500 = vrsqrt.pop %v474
    %v501 = vmul.f32 %v474, %v500
    %vm502 = vcmp.eq.f32.partialorder %v474, inf
    %v503 = vsel %vm502, %v474, %v501
    %vm504 = vcmp.eq.f32.partialorder %v474, 0.0
    %v505 = vand.u32 %v474, 2147483648
    %v506 = vsel %vm504, %v505, %v503
    %v507 = vrsqrt.pop %v475
    %v508 = vmul.f32 %v475, %v507
    %vm509 = vcmp.eq.f32.partialorder %v475, inf
    %v510 = vsel %vm509, %v475, %v508
    %vm511 = vcmp.eq.f32.partialorder %v475, 0.0
    %v512 = vand.u32 %v475, 2147483648
    %v513 = vsel %vm511, %v512, %v510
    %v514 = vrsqrt.pop %v476
    %v515 = vmul.f32 %v476, %v514
    %vm516 = vcmp.eq.f32.partialorder %v476, inf
    %v517 = vsel %vm516, %v476, %v515
    %vm518 = vcmp.eq.f32.partialorder %v476, 0.0
    %v519 = vand.u32 %v476, 2147483648
    %v520 = vsel %vm518, %v519, %v517
    %v521 = vrsqrt.pop %v477
    %v522 = vmul.f32 %v477, %v521
    %vm523 = vcmp.eq.f32.partialorder %v477, inf
    %v524 = vsel %vm523, %v477, %v522
    %vm525 = vcmp.eq.f32.partialorder %v477, 0.0
    %v526 = vand.u32 %v477, 2147483648
    %v527 = vsel %vm525, %v526, %v524
    %v528 = vrsqrt.pop %v478
    %v529 = vmul.f32 %v478, %v528
    %vm530 = vcmp.eq.f32.partialorder %v478, inf
    %v531 = vsel %vm530, %v478, %v529
    %vm532 = vcmp.eq.f32.partialorder %v478, 0.0
    %v533 = vand.u32 %v478, 2147483648
    %v534 = vsel %vm532, %v533, %v531
    %vm535 = vcmp.lt.f32.partialorder %v471, 0.0
    %vm536 = vcmp.lt.f32.partialorder %v472, 0.0
    %vm537 = vcmp.lt.f32.partialorder %v473, 0.0
    %vm538 = vcmp.lt.f32.partialorder %v474, 0.0
    %vm539 = vcmp.lt.f32.partialorder %v475, 0.0
    %vm540 = vcmp.lt.f32.partialorder %v476, 0.0
    %vm541 = vcmp.lt.f32.partialorder %v477, 0.0
    %vm542 = vcmp.lt.f32.partialorder %v478, 0.0
    %v543 = vsel %vm535, -1.0, 1.0
    %v544 = vsel %vm536, -1.0, 1.0
    %v545 = vsel %vm537, -1.0, 1.0
    %v546 = vsel %vm538, -1.0, 1.0
    %v547 = vsel %vm539, -1.0, 1.0
    %v548 = vsel %vm540, -1.0, 1.0
    %v549 = vsel %vm541, -1.0, 1.0
    %v550 = vsel %vm542, -1.0, 1.0
    %v551 = vand.u32 2147483647, %v471
    %v552 = vand.u32 2147483647, %v472
    %v553 = vand.u32 2147483647, %v473
    %v554 = vand.u32 2147483647, %v474
    %v555 = vand.u32 2147483647, %v475
    %v556 = vand.u32 2147483647, %v476
    %v557 = vand.u32 2147483647, %v477
    %v558 = vand.u32 2147483647, %v478
    %v559 = vlog2.pop %v551
    %v560 = vmul.f32 %v559, 0.6931472
    %v561 = vlog2.pop %v552
    %v562 = vmul.f32 %v561, 0.6931472
    %v563 = vlog2.pop %v553
    %v564 = vmul.f32 %v563, 0.6931472
    %v565 = vlog2.pop %v554
    %v566 = vmul.f32 %v565, 0.6931472
    %v567 = vlog2.pop %v555
    %v568 = vmul.f32 %v567, 0.6931472
    %v569 = vlog2.pop %v556
    %v570 = vmul.f32 %v569, 0.6931472
    %v571 = vlog2.pop %v557
    %v572 = vmul.f32 %v571, 0.6931472
    %v573 = vlog2.pop %v558
    %v574 = vmul.f32 %v573, 0.6931472
    %v575 = vmul.f32 %v560, 0.33333334
    %v576 = vmul.f32 %v562, 0.33333334
    %v577 = vmul.f32 %v564, 0.33333334
    %v578 = vmul.f32 %v566, 0.33333334
    %v579 = vmul.f32 %v568, 0.33333334
    %v580 = vmul.f32 %v570, 0.33333334
    %v581 = vmul.f32 %v572, 0.33333334
    %v582 = vmul.f32 %v574, 0.33333334
    %v583 = vmul.f32 %v575, 1.442695
    %v584 = vpow.pop %v583
    %v585 = vmul.f32 %v576, 1.442695
    %v586 = vpow.pop %v585
    %v587 = vmul.f32 %v577, 1.442695
    %v588 = vpow.pop %v587
    %v589 = vmul.f32 %v578, 1.442695
    %v590 = vpow.pop %v589
    %v591 = vmul.f32 %v579, 1.442695
    %v592 = vpow.pop %v591
    %v593 = vmul.f32 %v580, 1.442695
    %v594 = vpow.pop %v593
    %v595 = vmul.f32 %v581, 1.442695
    %v596 = vpow.pop %v595
    %v597 = vmul.f32 %v582, 1.442695
    %v598 = vpow.pop %v597
    %v599 = vmul.f32 %v543, %v584
    %v600 = vmul.f32 %v544, %v586
    %v601 = vmul.f32 %v545, %v588
    %v602 = vmul.f32 %v546, %v590
    %v603 = vmul.f32 %v547, %v592
    %v604 = vmul.f32 %v548, %v594
    %v605 = vmul.f32 %v549, %v596
    %v606 = vmul.f32 %v550, %v598
    %615 = vrot.lane.b32.xlu0 %v485, 96
    %v616 = vpop.permute.xlu0 %615
    %617 = vrot.lane.b32.xlu0 %v492, 96
    %v618 = vpop.permute.xlu0 %617
    %619 = vrot.lane.b32.xlu0 %v499, 96
    %v620 = vpop.permute.xlu0 %619
    %621 = vrot.lane.b32.xlu0 %v506, 96
    %v622 = vpop.permute.xlu0 %621
    %623 = vrot.lane.b32.xlu0 %v513, 96
    %v624 = vpop.permute.xlu0 %623
    %625 = vrot.lane.b32.xlu0 %v520, 96
    %v626 = vpop.permute.xlu0 %625
    %627 = vrot.lane.b32.xlu0 %v527, 96
    %v628 = vpop.permute.xlu0 %627
    %629 = vrot.lane.b32.xlu0 %v534, 96
    %v630 = vpop.permute.xlu0 %629
    %647 = vrot.lane.b32.xlu0 %v599, 64
    %v648 = vpop.permute.xlu0 %647
    %649 = vrot.lane.b32.xlu0 %v600, 64
    %v650 = vpop.permute.xlu0 %649
    %651 = vrot.lane.b32.xlu0 %v601, 64
    %v652 = vpop.permute.xlu0 %651
    %653 = vrot.lane.b32.xlu0 %v602, 64
    %v654 = vpop.permute.xlu0 %653
    %655 = vrot.lane.b32.xlu0 %v603, 64
    %v656 = vpop.permute.xlu0 %655
    %657 = vrot.lane.b32.xlu0 %v604, 64
    %v658 = vpop.permute.xlu0 %657
    %659 = vrot.lane.b32.xlu0 %v605, 64
    %v660 = vpop.permute.xlu0 %659
    %661 = vrot.lane.b32.xlu0 %v606, 64
    %v662 = vpop.permute.xlu0 %661
    %v671 = vld [vmem:[#allocation4] sm:$0xff]
    %v672 = vld [vmem:[#allocation4 + $0x8] sm:$0xff]
    %v673 = vld [vmem:[#allocation4 + $0x10] sm:$0xff]
    %v674 = vld [vmem:[#allocation4 + $0x18] sm:$0xff]
    %v676 = vsel %vm316, %v425, 0
    %v679 = vsel %vm316, %v430, 0
    %v682 = vsel %vm316, %v435, 0
    %v685 = vsel %vm316, %v440, 0
    %v688 = vsel %vm316, %v445, 0
    %v691 = vsel %vm316, %v450, 0
    %v694 = vsel %vm316, %v455, 0
    %v697 = vsel %vm316, %v460, 0
    %v699 = vsel %vm316, %v616, 0
    %v701 = vsel %vm316, %v618, 0
    %v703 = vsel %vm316, %v620, 0
    %v705 = vsel %vm316, %v622, 0
    %v707 = vsel %vm316, %v624, 0
    %v709 = vsel %vm316, %v626, 0
    %v711 = vsel %vm316, %v628, 0
    %v713 = vsel %vm316, %v630, 0
    %v715 = vsel %vm316, %v648, 0
    %v717 = vsel %vm316, %v650, 0
    %v719 = vsel %vm316, %v652, 0
    %v721 = vsel %vm316, %v654, 0
    %v723 = vsel %vm316, %v656, 0
    %v725 = vsel %vm316, %v658, 0
    %v727 = vsel %vm316, %v660, 0
    %v729 = vsel %vm316, %v662, 0
    %731 = vmatprep.subr.mxu0 0.0
    %732 = vmatpush1.msra.mxu0 %v671
    %733 = vmatprep.subr.mxu0 0.0
    %734 = vmatpush1.msra.mxu0 %v672
    %735 = vmatprep.subr.mxu0 0.0
    %736 = vmatpush1.msra.mxu0 %v673
    %737 = vmatprep.subr.mxu0 0.0
    %738 = vmatpush1.msra.mxu0 %v674
    %739 = vmatprep.subr.mxu0 0.0
    %740 = vmatpush1.msra.mxu0 0.0
    %741 = vmatprep.subr.mxu0 0.0
    %742 = vmatpush1.msra.mxu0 0.0
    %743 = vmatprep.subr.mxu0 0.0
    %744 = vmatpush1.msra.mxu0 0.0
    %745 = vmatprep.subr.mxu0 0.0
    %746 = vmatpush1.msra.mxu0 0.0
    %747 = vmatprep.subr.mxu0 0.0
    %748 = vmatpush1.msra.mxu0 0.0
    %749 = vmatprep.subr.mxu0 0.0
    %750 = vmatpush1.msra.mxu0 0.0
    %751 = vmatprep.subr.mxu0 0.0
    %752 = vmatpush1.msra.mxu0 0.0
    %753 = vmatprep.subr.mxu0 0.0
    %754 = vmatpush1.msra.mxu0 0.0
    %755 = vmatprep.subr.mxu0 0.0
    %756 = vmatpush1.msra.mxu0 0.0
    %757 = vmatprep.subr.mxu0 0.0
    %758 = vmatpush1.msra.mxu0 0.0
    %759 = vmatprep.subr.mxu0 0.0
    %760 = vmatpush1.msra.mxu0 0.0
    %761 = vmatprep.subr.mxu0 0.0
    %762 = vmatpush1.msra.mxu0 0.0
    %763 = vmatprep.subr.mxu0 0.0
    %764 = vmatpush1.msra.mxu0 0.0
    %765 = vmatprep.subr.mxu0 0.0
    %766 = vmatpush1.msra.mxu0 0.0
    %767 = vmatprep.subr.mxu0 0.0
    %768 = vmatpush1.msra.mxu0 0.0
    %769 = vmatprep.subr.mxu0 0.0
    %770 = vmatpush1.msra.mxu0 0.0
    %771 = vmatprep.subr.mxu0 0.0
    %772 = vmatpush1.msra.mxu0 0.0
    %773 = vmatprep.subr.mxu0 0.0
    %774 = vmatpush1.msra.mxu0 0.0
    %775 = vmatprep.subr.mxu0 0.0
    %776 = vmatpush1.msra.mxu0 0.0
    %777 = vmatprep.subr.mxu0 0.0
    %778 = vmatpush1.msra.mxu0 0.0
    %779 = vmatprep.subr.mxu0 0.0
    %780 = vmatpush1.msra.mxu0 0.0
    %781 = vmatprep.subr.mxu0 0.0
    %782 = vmatpush1.msra.mxu0 0.0
    %783 = vmatprep.subr.mxu0 0.0
    %784 = vmatpush1.msra.mxu0 0.0
    %785 = vmatprep.subr.mxu0 0.0
    %786 = vmatpush1.msra.mxu0 0.0
    %787 = vmatprep.subr.mxu0 0.0
    %788 = vmatpush1.msra.mxu0 0.0
    %789 = vmatprep.subr.mxu0 0.0
    %790 = vmatpush1.msra.mxu0 0.0
    %791 = vmatprep.subr.mxu0 0.0
    %792 = vmatpush1.msra.mxu0 0.0
    %793 = vmatprep.subr.mxu0 0.0
    %794 = vmatpush1.msra.mxu0 0.0
    %795 = vmatprep.mubr.f32.mxu0 0.0
    %796 = vmatmul.mubr.f32.gmra.mrb[0].mxu0 %v676
    %v797 = vpop.f32.mrb[0].mxu0
    %v798 = vadd.f32 0.0, %v797
    %v799 = vpop.f32.mrb[0].mxu0
    %800 = vmatprep.mubr.f32.mxu0 0.0
    %801 = vmatmul.mubr.f32.gmra.mrb[0].mxu0 %v679
    %v802 = vpop.f32.mrb[0].mxu0
    %v803 = vadd.f32 0.0, %v802
    %v804 = vpop.f32.mrb[0].mxu0
    %805 = vmatprep.mubr.f32.mxu0 0.0
    %806 = vmatmul.mubr.f32.gmra.mrb[0].mxu0 %v682
    %v807 = vpop.f32.mrb[0].mxu0
    %v808 = vadd.f32 0.0, %v807
    %v809 = vpop.f32.mrb[0].mxu0
    %810 = vmatprep.mubr.f32.mxu0 0.0
    %811 = vmatmul.mubr.f32.gmra.mrb[0].mxu0 %v685
    %v812 = vpop.f32.mrb[0].mxu0
    %v813 = vadd.f32 0.0, %v812
    %v814 = vpop.f32.mrb[0].mxu0
    %815 = vmatprep.mubr.f32.mxu0 0.0
    %816 = vmatmul.mubr.f32.gmra.mrb[0].mxu0 %v688
    %v817 = vpop.f32.mrb[0].mxu0
    %v818 = vadd.f32 0.0, %v817
    %v819 = vpop.f32.mrb[0].mxu0
    %820 = vmatprep.mubr.f32.mxu0 0.0
    %821 = vmatmul.mubr.f32.gmra.mrb[0].mxu0 %v691
    %v822 = vpop.f32.mrb[0].mxu0
    %v823 = vadd.f32 0.0, %v822
    %v824 = vpop.f32.mrb[0].mxu0
    %825 = vmatprep.mubr.f32.mxu0 0.0
    %826 = vmatmul.mubr.f32.gmra.mrb[0].mxu0 %v694
    %v827 = vpop.f32.mrb[0].mxu0
    %v828 = vadd.f32 0.0, %v827
    %v829 = vpop.f32.mrb[0].mxu0
    %830 = vmatprep.mubr.f32.mxu0 0.0
    %831 = vmatmul.mubr.f32.gmra.mrb[0].mxu0 %v697
    %v832 = vpop.f32.mrb[0].mxu0
    %v833 = vadd.f32 0.0, %v832
    %v834 = vpop.f32.mrb[0].mxu0
    %835 = vmatprep.mubr.f32.mxu0 0.0
    %836 = vmatmul.mubr.f32.gmra.mrb[0].mxu0 %v699
    %v837 = vpop.f32.mrb[0].mxu0
    %v838 = vadd.f32 0.0, %v837
    %v839 = vpop.f32.mrb[0].mxu0
    %840 = vmatprep.mubr.f32.mxu0 0.0
    %841 = vmatmul.mubr.f32.gmra.mrb[0].mxu0 %v701
    %v842 = vpop.f32.mrb[0].mxu0
    %v843 = vadd.f32 0.0, %v842
    %v844 = vpop.f32.mrb[0].mxu0
    %845 = vmatprep.mubr.f32.mxu0 0.0
    %846 = vmatmul.mubr.f32.gmra.mrb[0].mxu0 %v703
    %v847 = vpop.f32.mrb[0].mxu0
    %v848 = vadd.f32 0.0, %v847
    %v849 = vpop.f32.mrb[0].mxu0
    %850 = vmatprep.mubr.f32.mxu0 0.0
    %851 = vmatmul.mubr.f32.gmra.mrb[0].mxu0 %v705
    %v852 = vpop.f32.mrb[0].mxu0
    %v853 = vadd.f32 0.0, %v852
    %v854 = vpop.f32.mrb[0].mxu0
    %855 = vmatprep.mubr.f32.mxu0 0.0
    %856 = vmatmul.mubr.f32.gmra.mrb[0].mxu0 %v707
    %v857 = vpop.f32.mrb[0].mxu0
    %v858 = vadd.f32 0.0, %v857
    %v859 = vpop.f32.mrb[0].mxu0
    %860 = vmatprep.mubr.f32.mxu0 0.0
    %861 = vmatmul.mubr.f32.gmra.mrb[0].mxu0 %v709
    %v862 = vpop.f32.mrb[0].mxu0
    %v863 = vadd.f32 0.0, %v862
    %v864 = vpop.f32.mrb[0].mxu0
    %865 = vmatprep.mubr.f32.mxu0 0.0
    %866 = vmatmul.mubr.f32.gmra.mrb[0].mxu0 %v711
    %v867 = vpop.f32.mrb[0].mxu0
    %v868 = vadd.f32 0.0, %v867
    %v869 = vpop.f32.mrb[0].mxu0
    %870 = vmatprep.mubr.f32.mxu0 0.0
    %871 = vmatmul.mubr.f32.gmra.mrb[0].mxu0 %v713
    %v872 = vpop.f32.mrb[0].mxu0
    %v873 = vadd.f32 0.0, %v872
    %v874 = vpop.f32.mrb[0].mxu0
    %875 = vmatprep.mubr.f32.mxu0 0.0
    %876 = vmatmul.mubr.f32.gmra.mrb[0].mxu0 %v715
    %v877 = vpop.f32.mrb[0].mxu0
    %v878 = vadd.f32 0.0, %v877
    %v879 = vpop.f32.mrb[0].mxu0
    %880 = vmatprep.mubr.f32.mxu0 0.0
    %881 = vmatmul.mubr.f32.gmra.mrb[0].mxu0 %v717
    %v882 = vpop.f32.mrb[0].mxu0
    %v883 = vadd.f32 0.0, %v882
    %v884 = vpop.f32.mrb[0].mxu0
    %885 = vmatprep.mubr.f32.mxu0 0.0
    %886 = vmatmul.mubr.f32.gmra.mrb[0].mxu0 %v719
    %v887 = vpop.f32.mrb[0].mxu0
    %v888 = vadd.f32 0.0, %v887
    %v889 = vpop.f32.mrb[0].mxu0
    %890 = vmatprep.mubr.f32.mxu0 0.0
    %891 = vmatmul.mubr.f32.gmra.mrb[0].mxu0 %v721
    %v892 = vpop.f32.mrb[0].mxu0
    %v893 = vadd.f32 0.0, %v892
    %v894 = vpop.f32.mrb[0].mxu0
    %895 = vmatprep.mubr.f32.mxu0 0.0
    %896 = vmatmul.mubr.f32.gmra.mrb[0].mxu0 %v723
    %v897 = vpop.f32.mrb[0].mxu0
    %v898 = vadd.f32 0.0, %v897
    %v899 = vpop.f32.mrb[0].mxu0
    %900 = vmatprep.mubr.f32.mxu0 0.0
    %901 = vmatmul.mubr.f32.gmra.mrb[0].mxu0 %v725
    %v902 = vpop.f32.mrb[0].mxu0
    %v903 = vadd.f32 0.0, %v902
    %v904 = vpop.f32.mrb[0].mxu0
    %905 = vmatprep.mubr.f32.mxu0 0.0
    %906 = vmatmul.mubr.f32.gmra.mrb[0].mxu0 %v727
    %v907 = vpop.f32.mrb[0].mxu0
    %v908 = vadd.f32 0.0, %v907
    %v909 = vpop.f32.mrb[0].mxu0
    %910 = vmatprep.mubr.f32.mxu0 0.0
    %911 = vmatmul.mubr.f32.gmra.mrb[0].mxu0 %v729
    %v912 = vpop.f32.mrb[0].mxu0
    %v913 = vadd.f32 0.0, %v912
    %v914 = vpop.f32.mrb[0].mxu0
    %915 = vdwg.mxu0
    %v916 = vld [vmem:[%s4] sm:$0xff]
    %v917 = vld [vmem:[%s4 + $0x8] sm:$0xff]
    %v918 = vld [vmem:[%s4 + $0x10] sm:$0xff]
    %v919 = vld [vmem:[%s4 + $0x18] sm:$0xff]
    %v920 = vld [vmem:[#allocation6] sm:$0xff]
    %v921 = vld [vmem:[#allocation6 + $0x8] sm:$0xff]
    %v922 = vld [vmem:[#allocation6 + $0x10] sm:$0xff]
    %v923 = vld [vmem:[#allocation6 + $0x18] sm:$0xff]
    %v924 = vmul.f32 %v425, 0.9
    %v925 = vmul.f32 %v430, 0.9
    %v926 = vmul.f32 %v435, 0.9
    %v927 = vmul.f32 %v440, 0.9
    %v928 = vmul.f32 %v445, 0.9
    %v929 = vmul.f32 %v450, 0.9
    %v930 = vmul.f32 %v455, 0.9
    %v931 = vmul.f32 %v460, 0.9
    %v932 = vmul.f32 %v228, 0.1
    %v933 = vmul.f32 %v229, 0.1
    %v934 = vmul.f32 %v230, 0.1
    %v935 = vmul.f32 %v231, 0.1
    %v936 = vmul.f32 %v232, 0.1
    %v937 = vmul.f32 %v233, 0.1
    %v938 = vmul.f32 %v234, 0.1
    %v939 = vmul.f32 %v235, 0.1
    %v940 = vadd.f32 %v924, %v932
    %v941 = vadd.f32 %v925, %v933
    %v942 = vadd.f32 %v926, %v934
    %v943 = vadd.f32 %v927, %v935
    %v944 = vadd.f32 %v928, %v936
    %v945 = vadd.f32 %v929, %v937
    %v946 = vadd.f32 %v930, %v938
    %v947 = vadd.f32 %v931, %v939
    %v949 = vsel %vm316, %v940, 0
    %v952 = vsel %vm316, %v941, 0
    %v955 = vsel %vm316, %v942, 0
    %v958 = vsel %vm316, %v943, 0
    %v961 = vsel %vm316, %v944, 0
    %v964 = vsel %vm316, %v945, 0
    %v967 = vsel %vm316, %v946, 0
    %v970 = vsel %vm316, %v947, 0
    %972 = vmatprep.subr.mxu0 0.0
    %973 = vmatpush1.msra.mxu0 %v916
    %974 = vmatprep.subr.mxu0 0.0
    %975 = vmatpush1.msra.mxu0 %v917
    %976 = vmatprep.subr.mxu0 0.0
    %977 = vmatpush1.msra.mxu0 %v918
    %978 = vmatprep.subr.mxu0 0.0
    %979 = vmatpush1.msra.mxu0 %v919
    %980 = vmatprep.subr.mxu0 0.0
    %981 = vmatpush1.msra.mxu0 0.0
    %982 = vmatprep.subr.mxu0 0.0
    %983 = vmatpush1.msra.mxu0 0.0
    %984 = vmatprep.subr.mxu0 0.0
    %985 = vmatpush1.msra.mxu0 0.0
    %986 = vmatprep.subr.mxu0 0.0
    %987 = vmatpush1.msra.mxu0 0.0
    %988 = vmatprep.subr.mxu0 0.0
    %989 = vmatpush1.msra.mxu0 0.0
    %990 = vmatprep.subr.mxu0 0.0
    %991 = vmatpush1.msra.mxu0 0.0
    %992 = vmatprep.subr.mxu0 0.0
    %993 = vmatpush1.msra.mxu0 0.0
    %994 = vmatprep.subr.mxu0 0.0
    %995 = vmatpush1.msra.mxu0 0.0
    %996 = vmatprep.subr.mxu0 0.0
    %997 = vmatpush1.msra.mxu0 0.0
    %998 = vmatprep.subr.mxu0 0.0
    %999 = vmatpush1.msra.mxu0 0.0
    %1000 = vmatprep.subr.mxu0 0.0
    %1001 = vmatpush1.msra.mxu0 0.0
    %1002 = vmatprep.subr.mxu0 0.0
    %1003 = vmatpush1.msra.mxu0 0.0
    %1004 = vmatprep.subr.mxu0 0.0
    %1005 = vmatpush1.msra.mxu0 0.0
    %1006 = vmatprep.subr.mxu0 0.0
    %1007 = vmatpush1.msra.mxu0 0.0
    %1008 = vmatprep.subr.mxu0 0.0
    %1009 = vmatpush1.msra.mxu0 0.0
    %1010 = vmatprep.subr.mxu0 0.0
    %1011 = vmatpush1.msra.mxu0 0.0
    %1012 = vmatprep.subr.mxu0 0.0
    %1013 = vmatpush1.msra.mxu0 0.0
    %1014 = vmatprep.subr.mxu0 0.0
    %1015 = vmatpush1.msra.mxu0 0.0
    %1016 = vmatprep.subr.mxu0 0.0
    %1017 = vmatpush1.msra.mxu0 0.0
    %1018 = vmatprep.subr.mxu0 0.0
    %1019 = vmatpush1.msra.mxu0 0.0
    %1020 = vmatprep.subr.mxu0 0.0
    %1021 = vmatpush1.msra.mxu0 0.0
    %1022 = vmatprep.subr.mxu0 0.0
    %1023 = vmatpush1.msra.mxu0 0.0
    %1024 = vmatprep.subr.mxu0 0.0
    %1025 = vmatpush1.msra.mxu0 0.0
    %1026 = vmatprep.subr.mxu0 0.0
    %1027 = vmatpush1.msra.mxu0 0.0
    %1028 = vmatprep.subr.mxu0 0.0
    %1029 = vmatpush1.msra.mxu0 0.0
    %1030 = vmatprep.subr.mxu0 0.0
    %1031 = vmatpush1.msra.mxu0 0.0
    %1032 = vmatprep.subr.mxu0 0.0
    %1033 = vmatpush1.msra.mxu0 0.0
    %1034 = vmatprep.subr.mxu0 0.0
    %1035 = vmatpush1.msra.mxu0 0.0
    %1036 = vmatprep.mubr.f32.mxu0 0.0
    %1037 = vmatmul.mubr.f32.gmra.mrb[0].mxu0 %v949
    %v1038 = vpop.f32.mrb[0].mxu0
    %v1039 = vadd.f32 0.0, %v1038
    %v1040 = vpop.f32.mrb[0].mxu0
    %1041 = vmatprep.mubr.f32.mxu0 0.0
    %1042 = vmatmul.mubr.f32.gmra.mrb[0].mxu0 %v952
    %v1043 = vpop.f32.mrb[0].mxu0
    %v1044 = vadd.f32 0.0, %v1043
    %v1045 = vpop.f32.mrb[0].mxu0
    %1046 = vmatprep.mubr.f32.mxu0 0.0
    %1047 = vmatmul.mubr.f32.gmra.mrb[0].mxu0 %v955
    %v1048 = vpop.f32.mrb[0].mxu0
    %v1049 = vadd.f32 0.0, %v1048
    %v1050 = vpop.f32.mrb[0].mxu0
    %1051 = vmatprep.mubr.f32.mxu0 0.0
    %1052 = vmatmul.mubr.f32.gmra.mrb[0].mxu0 %v958
    %v1053 = vpop.f32.mrb[0].mxu0
    %v1054 = vadd.f32 0.0, %v1053
    %v1055 = vpop.f32.mrb[0].mxu0
    %1056 = vmatprep.mubr.f32.mxu0 0.0
    %1057 = vmatmul.mubr.f32.gmra.mrb[0].mxu0 %v961
    %v1058 = vpop.f32.mrb[0].mxu0
    %v1059 = vadd.f32 0.0, %v1058
    %v1060 = vpop.f32.mrb[0].mxu0
    %1061 = vmatprep.mubr.f32.mxu0 0.0
    %1062 = vmatmul.mubr.f32.gmra.mrb[0].mxu0 %v964
    %v1063 = vpop.f32.mrb[0].mxu0
    %v1064 = vadd.f32 0.0, %v1063
    %v1065 = vpop.f32.mrb[0].mxu0
    %1066 = vmatprep.mubr.f32.mxu0 0.0
    %1067 = vmatmul.mubr.f32.gmra.mrb[0].mxu0 %v967
    %v1068 = vpop.f32.mrb[0].mxu0
    %v1069 = vadd.f32 0.0, %v1068
    %v1070 = vpop.f32.mrb[0].mxu0
    %1071 = vmatprep.mubr.f32.mxu0 0.0
    %1072 = vmatmul.mubr.f32.gmra.mrb[0].mxu0 %v970
    %v1073 = vpop.f32.mrb[0].mxu0
    %v1074 = vadd.f32 0.0, %v1073
    %v1075 = vpop.f32.mrb[0].mxu0
    %1076 = vdwg.mxu0
    %v1078 = vsel %vm316, %v1039, 0
    %v1081 = vsel %vm316, %v1044, 0
    %v1084 = vsel %vm316, %v1049, 0
    %v1087 = vsel %vm316, %v1054, 0
    %v1090 = vsel %vm316, %v1059, 0
    %v1093 = vsel %vm316, %v1064, 0
    %v1096 = vsel %vm316, %v1069, 0
    %v1099 = vsel %vm316, %v1074, 0
    %1101 = vmatprep.subr.mxu0 0.0
    %1102 = vmatpush1.msra.mxu0 %v920
    %1103 = vmatprep.subr.mxu0 0.0
    %1104 = vmatpush1.msra.mxu0 %v921
    %1105 = vmatprep.subr.mxu0 0.0
    %1106 = vmatpush1.msra.mxu0 %v922
    %1107 = vmatprep.subr.mxu0 0.0
    %1108 = vmatpush1.msra.mxu0 %v923
    %1109 = vmatprep.subr.mxu0 0.0
    %1110 = vmatpush1.msra.mxu0 0.0
    %1111 = vmatprep.subr.mxu0 0.0
    %1112 = vmatpush1.msra.mxu0 0.0
    %1113 = vmatprep.subr.mxu0 0.0
    %1114 = vmatpush1.msra.mxu0 0.0
    %1115 = vmatprep.subr.mxu0 0.0
    %1116 = vmatpush1.msra.mxu0 0.0
    %1117 = vmatprep.subr.mxu0 0.0
    %1118 = vmatpush1.msra.mxu0 0.0
    %1119 = vmatprep.subr.mxu0 0.0
    %1120 = vmatpush1.msra.mxu0 0.0
    %1121 = vmatprep.subr.mxu0 0.0
    %1122 = vmatpush1.msra.mxu0 0.0
    %1123 = vmatprep.subr.mxu0 0.0
    %1124 = vmatpush1.msra.mxu0 0.0
    %1125 = vmatprep.subr.mxu0 0.0
    %1126 = vmatpush1.msra.mxu0 0.0
    %1127 = vmatprep.subr.mxu0 0.0
    %1128 = vmatpush1.msra.mxu0 0.0
    %1129 = vmatprep.subr.mxu0 0.0
    %1130 = vmatpush1.msra.mxu0 0.0
    %1131 = vmatprep.subr.mxu0 0.0
    %1132 = vmatpush1.msra.mxu0 0.0
    %1133 = vmatprep.subr.mxu0 0.0
    %1134 = vmatpush1.msra.mxu0 0.0
    %1135 = vmatprep.subr.mxu0 0.0
    %1136 = vmatpush1.msra.mxu0 0.0
    %1137 = vmatprep.subr.mxu0 0.0
    %1138 = vmatpush1.msra.mxu0 0.0
    %1139 = vmatprep.subr.mxu0 0.0
    %1140 = vmatpush1.msra.mxu0 0.0
    %1141 = vmatprep.subr.mxu0 0.0
    %1142 = vmatpush1.msra.mxu0 0.0
    %1143 = vmatprep.subr.mxu0 0.0
    %1144 = vmatpush1.msra.mxu0 0.0
    %1145 = vmatprep.subr.mxu0 0.0
    %1146 = vmatpush1.msra.mxu0 0.0
    %1147 = vmatprep.subr.mxu0 0.0
    %1148 = vmatpush1.msra.mxu0 0.0
    %1149 = vmatprep.subr.mxu0 0.0
    %1150 = vmatpush1.msra.mxu0 0.0
    %1151 = vmatprep.subr.mxu0 0.0
    %1152 = vmatpush1.msra.mxu0 0.0
    %1153 = vmatprep.subr.mxu0 0.0
    %1154 = vmatpush1.msra.mxu0 0.0
    %1155 = vmatprep.subr.mxu0 0.0
    %1156 = vmatpush1.msra.mxu0 0.0
    %1157 = vmatprep.subr.mxu0 0.0
    %1158 = vmatpush1.msra.mxu0 0.0
    %1159 = vmatprep.subr.mxu0 0.0
    %1160 = vmatpush1.msra.mxu0 0.0
    %1161 = vmatprep.subr.mxu0 0.0
    %1162 = vmatpush1.msra.mxu0 0.0
    %1163 = vmatprep.subr.mxu0 0.0
    %1164 = vmatpush1.msra.mxu0 0.0
    %1165 = vmatprep.mubr.f32.mxu0 0.0
    %1166 = vmatmul.mubr.f32.gmra.mrb[0].mxu0 %v1078
    %v1167 = vpop.f32.mrb[0].mxu0
    %v1168 = vadd.f32 0.0, %v1167
    %v1169 = vpop.f32.mrb[0].mxu0
    %1170 = vmatprep.mubr.f32.mxu0 0.0
    %1171 = vmatmul.mubr.f32.gmra.mrb[0].mxu0 %v1081
    %v1172 = vpop.f32.mrb[0].mxu0
    %v1173 = vadd.f32 0.0, %v1172
    %v1174 = vpop.f32.mrb[0].mxu0
    %1175 = vmatprep.mubr.f32.mxu0 0.0
    %1176 = vmatmul.mubr.f32.gmra.mrb[0].mxu0 %v1084
    %v1177 = vpop.f32.mrb[0].mxu0
    %v1178 = vadd.f32 0.0, %v1177
    %v1179 = vpop.f32.mrb[0].mxu0
    %1180 = vmatprep.mubr.f32.mxu0 0.0
    %1181 = vmatmul.mubr.f32.gmra.mrb[0].mxu0 %v1087
    %v1182 = vpop.f32.mrb[0].mxu0
    %v1183 = vadd.f32 0.0, %v1182
    %v1184 = vpop.f32.mrb[0].mxu0
    %1185 = vmatprep.mubr.f32.mxu0 0.0
    %1186 = vmatmul.mubr.f32.gmra.mrb[0].mxu0 %v1090
    %v1187 = vpop.f32.mrb[0].mxu0
    %v1188 = vadd.f32 0.0, %v1187
    %v1189 = vpop.f32.mrb[0].mxu0
    %1190 = vmatprep.mubr.f32.mxu0 0.0
    %1191 = vmatmul.mubr.f32.gmra.mrb[0].mxu0 %v1093
    %v1192 = vpop.f32.mrb[0].mxu0
    %v1193 = vadd.f32 0.0, %v1192
    %v1194 = vpop.f32.mrb[0].mxu0
    %1195 = vmatprep.mubr.f32.mxu0 0.0
    %1196 = vmatmul.mubr.f32.gmra.mrb[0].mxu0 %v1096
    %v1197 = vpop.f32.mrb[0].mxu0
    %v1198 = vadd.f32 0.0, %v1197
    %v1199 = vpop.f32.mrb[0].mxu0
    %1200 = vmatprep.mubr.f32.mxu0 0.0
    %1201 = vmatmul.mubr.f32.gmra.mrb[0].mxu0 %v1099
    %v1202 = vpop.f32.mrb[0].mxu0
    %v1203 = vadd.f32 0.0, %v1202
    %v1204 = vpop.f32.mrb[0].mxu0
    %1205 = vdwg.mxu0
    %v1206 = vadd.f32 %v798, %v1168
    %v1207 = vadd.f32 %v803, %v1173
    %v1208 = vadd.f32 %v808, %v1178
    %v1209 = vadd.f32 %v813, %v1183
    %v1210 = vadd.f32 %v818, %v1188
    %v1211 = vadd.f32 %v823, %v1193
    %v1212 = vadd.f32 %v828, %v1198
    %v1213 = vadd.f32 %v833, %v1203
    %vm1214 = vcmp.gt.f32.partialorder %v1206, 0.0
    %vm1215 = vcmp.gt.f32.partialorder %v1207, 0.0
    %vm1216 = vcmp.gt.f32.partialorder %v1208, 0.0
    %vm1217 = vcmp.gt.f32.partialorder %v1209, 0.0
    %vm1218 = vcmp.gt.f32.partialorder %v1210, 0.0
    %vm1219 = vcmp.gt.f32.partialorder %v1211, 0.0
    %vm1220 = vcmp.gt.f32.partialorder %v1212, 0.0
    %vm1221 = vcmp.gt.f32.partialorder %v1213, 0.0
    %v1222 = vmin.f32 %v1206, 0.0
    %v1223 = vmin.f32 %v1207, 0.0
    %v1224 = vmin.f32 %v1208, 0.0
    %v1225 = vmin.f32 %v1209, 0.0
    %v1226 = vmin.f32 %v1210, 0.0
    %v1227 = vmin.f32 %v1211, 0.0
    %v1228 = vmin.f32 %v1212, 0.0
    %v1229 = vmin.f32 %v1213, 0.0
    %v1230 = vmul.f32 %v1222, 1.442695
    %v1231 = vpow.pop %v1230
    %v1232 = vmul.f32 %v1223, 1.442695
    %v1233 = vpow.pop %v1232
    %v1234 = vmul.f32 %v1224, 1.442695
    %v1235 = vpow.pop %v1234
    %v1236 = vmul.f32 %v1225, 1.442695
    %v1237 = vpow.pop %v1236
    %v1238 = vmul.f32 %v1226, 1.442695
    %v1239 = vpow.pop %v1238
    %v1240 = vmul.f32 %v1227, 1.442695
    %v1241 = vpow.pop %v1240
    %v1242 = vmul.f32 %v1228, 1.442695
    %v1243 = vpow.pop %v1242
    %v1244 = vmul.f32 %v1229, 1.442695
    %v1245 = vpow.pop %v1244
    %v1246 = vsub.f32 %v1231, 1.0
    %v1247 = vsub.f32 %v1233, 1.0
    %v1248 = vsub.f32 %v1235, 1.0
    %v1249 = vsub.f32 %v1237, 1.0
    %v1250 = vsub.f32 %v1239, 1.0
    %v1251 = vsub.f32 %v1241, 1.0
    %v1252 = vsub.f32 %v1243, 1.0
    %v1253 = vsub.f32 %v1245, 1.0
    %v1254 = vsel %vm1214, %v1206, %v1246
    %v1255 = vsel %vm1215, %v1207, %v1247
    %v1256 = vsel %vm1216, %v1208, %v1248
    %v1257 = vsel %vm1217, %v1209, %v1249
    %v1258 = vsel %vm1218, %v1210, %v1250
    %v1259 = vsel %vm1219, %v1211, %v1251
    %v1260 = vsel %vm1220, %v1212, %v1252
    %v1261 = vsel %vm1221, %v1213, %v1253
    %v1262 = vadd.f32 %v838, %v1168
    %v1263 = vadd.f32 %v843, %v1173
    %v1264 = vadd.f32 %v848, %v1178
    %v1265 = vadd.f32 %v853, %v1183
    %v1266 = vadd.f32 %v858, %v1188
    %v1267 = vadd.f32 %v863, %v1193
    %v1268 = vadd.f32 %v868, %v1198
    %v1269 = vadd.f32 %v873, %v1203
    %vm1270 = vcmp.gt.f32.partialorder %v1262, 0.0
    %vm1271 = vcmp.gt.f32.partialorder %v1263, 0.0
    %vm1272 = vcmp.gt.f32.partialorder %v1264, 0.0
    %vm1273 = vcmp.gt.f32.partialorder %v1265, 0.0
    %vm1274 = vcmp.gt.f32.partialorder %v1266, 0.0
    %vm1275 = vcmp.gt.f32.partialorder %v1267, 0.0
    %vm1276 = vcmp.gt.f32.partialorder %v1268, 0.0
    %vm1277 = vcmp.gt.f32.partialorder %v1269, 0.0
    %v1278 = vmin.f32 %v1262, 0.0
    %v1279 = vmin.f32 %v1263, 0.0
    %v1280 = vmin.f32 %v1264, 0.0
    %v1281 = vmin.f32 %v1265, 0.0
    %v1282 = vmin.f32 %v1266, 0.0
    %v1283 = vmin.f32 %v1267, 0.0
    %v1284 = vmin.f32 %v1268, 0.0
    %v1285 = vmin.f32 %v1269, 0.0
    %v1286 = vmul.f32 %v1278, 1.442695
    %v1287 = vpow.pop %v1286
    %v1288 = vmul.f32 %v1279, 1.442695
    %v1289 = vpow.pop %v1288
    %v1290 = vmul.f32 %v1280, 1.442695
    %v1291 = vpow.pop %v1290
    %v1292 = vmul.f32 %v1281, 1.442695
    %v1293 = vpow.pop %v1292
    %v1294 = vmul.f32 %v1282, 1.442695
    %v1295 = vpow.pop %v1294
    %v1296 = vmul.f32 %v1283, 1.442695
    %v1297 = vpow.pop %v1296
    %v1298 = vmul.f32 %v1284, 1.442695
    %v1299 = vpow.pop %v1298
    %v1300 = vmul.f32 %v1285, 1.442695
    %v1301 = vpow.pop %v1300
    %v1302 = vsub.f32 %v1287, 1.0
    %v1303 = vsub.f32 %v1289, 1.0
    %v1304 = vsub.f32 %v1291, 1.0
    %v1305 = vsub.f32 %v1293, 1.0
    %v1306 = vsub.f32 %v1295, 1.0
    %v1307 = vsub.f32 %v1297, 1.0
    %v1308 = vsub.f32 %v1299, 1.0
    %v1309 = vsub.f32 %v1301, 1.0
    %v1310 = vsel %vm1270, %v1262, %v1302
    %v1311 = vsel %vm1271, %v1263, %v1303
    %v1312 = vsel %vm1272, %v1264, %v1304
    %v1313 = vsel %vm1273, %v1265, %v1305
    %v1314 = vsel %vm1274, %v1266, %v1306
    %v1315 = vsel %vm1275, %v1267, %v1307
    %v1316 = vsel %vm1276, %v1268, %v1308
    %v1317 = vsel %vm1277, %v1269, %v1309
    %v1318 = vadd.f32 %v878, %v1168
    %v1319 = vadd.f32 %v883, %v1173
    %v1320 = vadd.f32 %v888, %v1178
    %v1321 = vadd.f32 %v893, %v1183
    %v1322 = vadd.f32 %v898, %v1188
    %v1323 = vadd.f32 %v903, %v1193
    %v1324 = vadd.f32 %v908, %v1198
    %v1325 = vadd.f32 %v913, %v1203
    %vm1326 = vcmp.gt.f32.partialorder %v1318, 0.0
    %vm1327 = vcmp.gt.f32.partialorder %v1319, 0.0
    %vm1328 = vcmp.gt.f32.partialorder %v1320, 0.0
    %vm1329 = vcmp.gt.f32.partialorder %v1321, 0.0
    %vm1330 = vcmp.gt.f32.partialorder %v1322, 0.0
    %vm1331 = vcmp.gt.f32.partialorder %v1323, 0.0
    %vm1332 = vcmp.gt.f32.partialorder %v1324, 0.0
    %vm1333 = vcmp.gt.f32.partialorder %v1325, 0.0
    %v1334 = vmin.f32 %v1318, 0.0
    %v1335 = vmin.f32 %v1319, 0.0
    %v1336 = vmin.f32 %v1320, 0.0
    %v1337 = vmin.f32 %v1321, 0.0
    %v1338 = vmin.f32 %v1322, 0.0
    %v1339 = vmin.f32 %v1323, 0.0
    %v1340 = vmin.f32 %v1324, 0.0
    %v1341 = vmin.f32 %v1325, 0.0
    %v1342 = vmul.f32 %v1334, 1.442695
    %v1343 = vpow.pop %v1342
    %v1344 = vmul.f32 %v1335, 1.442695
    %v1345 = vpow.pop %v1344
    %v1346 = vmul.f32 %v1336, 1.442695
    %v1347 = vpow.pop %v1346
    %v1348 = vmul.f32 %v1337, 1.442695
    %v1349 = vpow.pop %v1348
    %v1350 = vmul.f32 %v1338, 1.442695
    %v1351 = vpow.pop %v1350
    %v1352 = vmul.f32 %v1339, 1.442695
    %v1353 = vpow.pop %v1352
    %v1354 = vmul.f32 %v1340, 1.442695
    %v1355 = vpow.pop %v1354
    %v1356 = vmul.f32 %v1341, 1.442695
    %v1357 = vpow.pop %v1356
    %v1358 = vsub.f32 %v1343, 1.0
    %v1359 = vsub.f32 %v1345, 1.0
    %v1360 = vsub.f32 %v1347, 1.0
    %v1361 = vsub.f32 %v1349, 1.0
    %v1362 = vsub.f32 %v1351, 1.0
    %v1363 = vsub.f32 %v1353, 1.0
    %v1364 = vsub.f32 %v1355, 1.0
    %v1365 = vsub.f32 %v1357, 1.0
    %v1366 = vsel %vm1326, %v1318, %v1358
    %v1367 = vsel %vm1327, %v1319, %v1359
    %v1368 = vsel %vm1328, %v1320, %v1360
    %v1369 = vsel %vm1329, %v1321, %v1361
    %v1370 = vsel %vm1330, %v1322, %v1362
    %v1371 = vsel %vm1331, %v1323, %v1363
    %v1372 = vsel %vm1332, %v1324, %v1364
    %v1373 = vsel %vm1333, %v1325, %v1365
    %v1374 = vmax.f32 %v1254, %v1310
    %v1375 = vmax.f32 %v1255, %v1311
    %v1376 = vmax.f32 %v1256, %v1312
    %v1377 = vmax.f32 %v1257, %v1313
    %v1378 = vmax.f32 %v1258, %v1314
    %v1379 = vmax.f32 %v1259, %v1315
    %v1380 = vmax.f32 %v1260, %v1316
    %v1381 = vmax.f32 %v1261, %v1317
    %v1382 = vmax.f32 %v1374, %v1366
    %v1383 = vmax.f32 %v1375, %v1367
    %v1384 = vmax.f32 %v1376, %v1368
    %v1385 = vmax.f32 %v1377, %v1369
    %v1386 = vmax.f32 %v1378, %v1370
    %v1387 = vmax.f32 %v1379, %v1371
    %v1388 = vmax.f32 %v1380, %v1372
    %v1389 = vmax.f32 %v1381, %v1373
    %v1390 = vsub.f32 %v1254, %v1382
    %v1391 = vsub.f32 %v1255, %v1383
    %v1392 = vsub.f32 %v1256, %v1384
    %v1393 = vsub.f32 %v1257, %v1385
    %v1394 = vsub.f32 %v1258, %v1386
    %v1395 = vsub.f32 %v1259, %v1387
    %v1396 = vsub.f32 %v1260, %v1388
    %v1397 = vsub.f32 %v1261, %v1389
    %v1398 = vmul.f32 %v1390, 1.442695
    %v1399 = vpow.pop %v1398
    %v1400 = vmul.f32 %v1391, 1.442695
    %v1401 = vpow.pop %v1400
    %v1402 = vmul.f32 %v1392, 1.442695
    %v1403 = vpow.pop %v1402
    %v1404 = vmul.f32 %v1393, 1.442695
    %v1405 = vpow.pop %v1404
    %v1406 = vmul.f32 %v1394, 1.442695
    %v1407 = vpow.pop %v1406
    %v1408 = vmul.f32 %v1395, 1.442695
    %v1409 = vpow.pop %v1408
    %v1410 = vmul.f32 %v1396, 1.442695
    %v1411 = vpow.pop %v1410
    %v1412 = vmul.f32 %v1397, 1.442695
    %v1413 = vpow.pop %v1412
    %v1414 = vsub.f32 %v1310, %v1382
    %v1415 = vsub.f32 %v1311, %v1383
    %v1416 = vsub.f32 %v1312, %v1384
    %v1417 = vsub.f32 %v1313, %v1385
    %v1418 = vsub.f32 %v1314, %v1386
    %v1419 = vsub.f32 %v1315, %v1387
    %v1420 = vsub.f32 %v1316, %v1388
    %v1421 = vsub.f32 %v1317, %v1389
    %v1422 = vmul.f32 %v1414, 1.442695
    %v1423 = vpow.pop %v1422
    %v1424 = vmul.f32 %v1415, 1.442695
    %v1425 = vpow.pop %v1424
    %v1426 = vmul.f32 %v1416, 1.442695
    %v1427 = vpow.pop %v1426
    %v1428 = vmul.f32 %v1417, 1.442695
    %v1429 = vpow.pop %v1428
    %v1430 = vmul.f32 %v1418, 1.442695
    %v1431 = vpow.pop %v1430
    %v1432 = vmul.f32 %v1419, 1.442695
    %v1433 = vpow.pop %v1432
    %v1434 = vmul.f32 %v1420, 1.442695
    %v1435 = vpow.pop %v1434
    %v1436 = vmul.f32 %v1421, 1.442695
    %v1437 = vpow.pop %v1436
    %v1438 = vsub.f32 %v1366, %v1382
    %v1439 = vsub.f32 %v1367, %v1383
    %v1440 = vsub.f32 %v1368, %v1384
    %v1441 = vsub.f32 %v1369, %v1385
    %v1442 = vsub.f32 %v1370, %v1386
    %v1443 = vsub.f32 %v1371, %v1387
    %v1444 = vsub.f32 %v1372, %v1388
    %v1445 = vsub.f32 %v1373, %v1389
    %v1446 = vmul.f32 %v1438, 1.442695
    %v1447 = vpow.pop %v1446
    %v1448 = vmul.f32 %v1439, 1.442695
    %v1449 = vpow.pop %v1448
    %v1450 = vmul.f32 %v1440, 1.442695
    %v1451 = vpow.pop %v1450
    %v1452 = vmul.f32 %v1441, 1.442695
    %v1453 = vpow.pop %v1452
    %v1454 = vmul.f32 %v1442, 1.442695
    %v1455 = vpow.pop %v1454
    %v1456 = vmul.f32 %v1443, 1.442695
    %v1457 = vpow.pop %v1456
    %v1458 = vmul.f32 %v1444, 1.442695
    %v1459 = vpow.pop %v1458
    %v1460 = vmul.f32 %v1445, 1.442695
    %v1461 = vpow.pop %v1460
    %v1462 = vmul.f32 %v425, %v1399
    %v1463 = vmul.f32 %v430, %v1401
    %v1464 = vmul.f32 %v435, %v1403
    %v1465 = vmul.f32 %v440, %v1405
    %v1466 = vmul.f32 %v445, %v1407
    %v1467 = vmul.f32 %v450, %v1409
    %v1468 = vmul.f32 %v455, %v1411
    %v1469 = vmul.f32 %v460, %v1413
    %v1470 = vmul.f32 %v616, %v1423
    %v1471 = vmul.f32 %v618, %v1425
    %v1472 = vmul.f32 %v620, %v1427
    %v1473 = vmul.f32 %v622, %v1429
    %v1474 = vmul.f32 %v624, %v1431
    %v1475 = vmul.f32 %v626, %v1433
    %v1476 = vmul.f32 %v628, %v1435
    %v1477 = vmul.f32 %v630, %v1437
    %v1478 = vadd.f32 %v1462, %v1470
    %v1479 = vadd.f32 %v1463, %v1471
    %v1480 = vadd.f32 %v1464, %v1472
    %v1481 = vadd.f32 %v1465, %v1473
    %v1482 = vadd.f32 %v1466, %v1474
    %v1483 = vadd.f32 %v1467, %v1475
    %v1484 = vadd.f32 %v1468, %v1476
    %v1485 = vadd.f32 %v1469, %v1477
    %v1486 = vmul.f32 %v648, %v1447
    %v1487 = vmul.f32 %v650, %v1449
    %v1488 = vmul.f32 %v652, %v1451
    %v1489 = vmul.f32 %v654, %v1453
    %v1490 = vmul.f32 %v656, %v1455
    %v1491 = vmul.f32 %v658, %v1457
    %v1492 = vmul.f32 %v660, %v1459
    %v1493 = vmul.f32 %v662, %v1461
    %v1494 = vadd.f32 %v1478, %v1486
    %v1495 = vadd.f32 %v1479, %v1487
    %v1496 = vadd.f32 %v1480, %v1488
    %v1497 = vadd.f32 %v1481, %v1489
    %v1498 = vadd.f32 %v1482, %v1490
    %v1499 = vadd.f32 %v1483, %v1491
    %v1500 = vadd.f32 %v1484, %v1492
    %v1501 = vadd.f32 %v1485, %v1493
    %v1502 = vadd.f32 %v1399, %v1423
    %v1503 = vadd.f32 %v1401, %v1425
    %v1504 = vadd.f32 %v1403, %v1427
    %v1505 = vadd.f32 %v1405, %v1429
    %v1506 = vadd.f32 %v1407, %v1431
    %v1507 = vadd.f32 %v1409, %v1433
    %v1508 = vadd.f32 %v1411, %v1435
    %v1509 = vadd.f32 %v1413, %v1437
    %v1510 = vadd.f32 %v1502, %v1447
    %v1511 = vadd.f32 %v1503, %v1449
    %v1512 = vadd.f32 %v1504, %v1451
    %v1513 = vadd.f32 %v1505, %v1453
    %v1514 = vadd.f32 %v1506, %v1455
    %v1515 = vadd.f32 %v1507, %v1457
    %v1516 = vadd.f32 %v1508, %v1459
    %v1517 = vadd.f32 %v1509, %v1461
    %v1518 = vrcp.pop %v1510
    %v1519 = vmul.f32 %v1494, %v1518
    %v1520 = vrcp.pop %v1511
    %v1521 = vmul.f32 %v1495, %v1520
    %v1522 = vrcp.pop %v1512
    %v1523 = vmul.f32 %v1496, %v1522
    %v1524 = vrcp.pop %v1513
    %v1525 = vmul.f32 %v1497, %v1524
    %v1526 = vrcp.pop %v1514
    %v1527 = vmul.f32 %v1498, %v1526
    %v1528 = vrcp.pop %v1515
    %v1529 = vmul.f32 %v1499, %v1528
    %v1530 = vrcp.pop %v1516
    %v1531 = vmul.f32 %v1500, %v1530
    %v1532 = vrcp.pop %v1517
    %v1533 = vmul.f32 %v1501, %v1532
    %v1534 = vmul.f32 %v1039, 0.9
    %v1535 = vmul.f32 %v1044, 0.9
    %v1536 = vmul.f32 %v1049, 0.9
    %v1537 = vmul.f32 %v1054, 0.9
    %v1538 = vmul.f32 %v1059, 0.9
    %v1539 = vmul.f32 %v1064, 0.9
    %v1540 = vmul.f32 %v1069, 0.9
    %v1541 = vmul.f32 %v1074, 0.9
    %v1542 = vmul.f32 %v1519, 0.1
    %v1543 = vmul.f32 %v1521, 0.1
    %v1544 = vmul.f32 %v1523, 0.1
    %v1545 = vmul.f32 %v1525, 0.1
    %v1546 = vmul.f32 %v1527, 0.1
    %v1547 = vmul.f32 %v1529, 0.1
    %v1548 = vmul.f32 %v1531, 0.1
    %v1549 = vmul.f32 %v1533, 0.1
    %v1550 = vadd.f32 %v1534, %v1542
    %v1551 = vadd.f32 %v1535, %v1543
    %v1552 = vadd.f32 %v1536, %v1544
    %v1553 = vadd.f32 %v1537, %v1545
    %v1554 = vadd.f32 %v1538, %v1546
    %v1555 = vadd.f32 %v1539, %v1547
    %v1556 = vadd.f32 %v1540, %v1548
    %v1557 = vadd.f32 %v1541, %v1549
    %v1558 = vmax.f32 %v1550, 0.0
    %v1559 = vmax.f32 %v1551, 0.0
    %v1560 = vmax.f32 %v1552, 0.0
    %v1561 = vmax.f32 %v1553, 0.0
    %v1562 = vmax.f32 %v1554, 0.0
    %v1563 = vmax.f32 %v1555, 0.0
    %v1564 = vmax.f32 %v1556, 0.0
    %v1565 = vmax.f32 %v1557, 0.0
    %s1566 = scalar_lea.vmem %s4, 32
    %v1567 = vld [vmem:[%s1566] sm:$0xff]
    %v1568 = vld [vmem:[%s1566 + $0x8] sm:$0xff]
    %v1569 = vld [vmem:[%s1566 + $0x10] sm:$0xff]
    %v1570 = vld [vmem:[%s1566 + $0x18] sm:$0xff]
    %s1571 = scalar_lea.vmem [#allocation6], 32
    %v1572 = vld [vmem:[%s1571] sm:$0xff]
    %v1573 = vld [vmem:[%s1571 + $0x8] sm:$0xff]
    %v1574 = vld [vmem:[%s1571 + $0x10] sm:$0xff]
    %v1575 = vld [vmem:[%s1571 + $0x18] sm:$0xff]
    %1576 = vmatprep.subr.mxu0 0.0
    %1577 = vmatpush1.msra.mxu0 %v1558
    %1578 = vmatprep.subr.mxu0 0.0
    %1579 = vmatpush1.msra.mxu0 %v1559
    %1580 = vmatprep.subr.mxu0 0.0
    %1581 = vmatpush1.msra.mxu0 %v1560
    %1582 = vmatprep.subr.mxu0 0.0
    %1583 = vmatpush1.msra.mxu0 %v1561
    %1584 = vmatprep.subr.mxu0 0.0
    %1585 = vmatpush1.msra.mxu0 %v1562
    %1586 = vmatprep.subr.mxu0 0.0
    %1587 = vmatpush1.msra.mxu0 %v1563
    %1588 = vmatprep.subr.mxu0 0.0
    %1589 = vmatpush1.msra.mxu0 %v1564
    %1590 = vmatprep.subr.mxu0 0.0
    %1591 = vmatpush1.msra.mxu0 %v1565
    %1592 = vmatprep.subr.mxu0 0.0
    %1593 = vmatpush1.msra.mxu0 0.0
    %1594 = vmatprep.subr.mxu0 0.0
    %1595 = vmatpush1.msra.mxu0 0.0
    %1596 = vmatprep.subr.mxu0 0.0
    %1597 = vmatpush1.msra.mxu0 0.0
    %1598 = vmatprep.subr.mxu0 0.0
    %1599 = vmatpush1.msra.mxu0 0.0
    %1600 = vmatprep.subr.mxu0 0.0
    %1601 = vmatpush1.msra.mxu0 0.0
    %1602 = vmatprep.subr.mxu0 0.0
    %1603 = vmatpush1.msra.mxu0 0.0
    %1604 = vmatprep.subr.mxu0 0.0
    %1605 = vmatpush1.msra.mxu0 0.0
    %1606 = vmatprep.subr.mxu0 0.0
    %1607 = vmatpush1.msra.mxu0 0.0
    %1608 = vmatprep.subr.mxu0 0.0
    %1609 = vmatpush1.msra.mxu0 0.0
    %1610 = vmatprep.subr.mxu0 0.0
    %1611 = vmatpush1.msra.mxu0 0.0
    %1612 = vmatprep.subr.mxu0 0.0
    %1613 = vmatpush1.msra.mxu0 0.0
    %1614 = vmatprep.subr.mxu0 0.0
    %1615 = vmatpush1.msra.mxu0 0.0
    %1616 = vmatprep.subr.mxu0 0.0
    %1617 = vmatpush1.msra.mxu0 0.0
    %1618 = vmatprep.subr.mxu0 0.0
    %1619 = vmatpush1.msra.mxu0 0.0
    %1620 = vmatprep.subr.mxu0 0.0
    %1621 = vmatpush1.msra.mxu0 0.0
    %1622 = vmatprep.subr.mxu0 0.0
    %1623 = vmatpush1.msra.mxu0 0.0
    %1624 = vmatprep.subr.mxu0 0.0
    %1625 = vmatpush1.msra.mxu0 0.0
    %1626 = vmatprep.subr.mxu0 0.0
    %1627 = vmatpush1.msra.mxu0 0.0
    %1628 = vmatprep.subr.mxu0 0.0
    %1629 = vmatpush1.msra.mxu0 0.0
    %1630 = vmatprep.subr.mxu0 0.0
    %1631 = vmatpush1.msra.mxu0 0.0
    %1632 = vmatprep.subr.mxu0 0.0
    %1633 = vmatpush1.msra.mxu0 0.0
    %1634 = vmatprep.subr.mxu0 0.0
    %1635 = vmatpush1.msra.mxu0 0.0
    %1636 = vmatprep.subr.mxu0 0.0
    %1637 = vmatpush1.msra.mxu0 0.0
    %1638 = vmatprep.subr.mxu0 0.0
    %1639 = vmatpush1.msra.mxu0 0.0
    %1640 = vmatprep.mubr.f32.mxu0 0.0
    %1641 = vmatmul.mubr.f32.gmra.mrb[0].mxu0 %v335
    %v1642 = vpop.f32.mrb[0].mxu0
    %v1643 = vadd.f32 0.0, %v1642
    %v1644 = vpop.f32.mrb[0].mxu0
    %1645 = vmatprep.mubr.f32.mxu0 0.0
    %1646 = vmatmul.mubr.f32.gmra.mrb[0].mxu0 %v338
    %v1647 = vpop.f32.mrb[0].mxu0
    %v1648 = vadd.f32 0.0, %v1647
    %v1649 = vpop.f32.mrb[0].mxu0
    %1650 = vmatprep.mubr.f32.mxu0 0.0
    %1651 = vmatmul.mubr.f32.gmra.mrb[0].mxu0 %v341
    %v1652 = vpop.f32.mrb[0].mxu0
    %v1653 = vadd.f32 0.0, %v1652
    %v1654 = vpop.f32.mrb[0].mxu0
    %1655 = vmatprep.mubr.f32.mxu0 0.0
    %1656 = vmatmul.mubr.f32.gmra.mrb[0].mxu0 %v344
    %v1657 = vpop.f32.mrb[0].mxu0
    %v1658 = vadd.f32 0.0, %v1657
    %v1659 = vpop.f32.mrb[0].mxu0
    %1660 = vmatprep.mubr.f32.mxu0 0.0
    %1661 = vmatmul.mubr.f32.gmra.mrb[0].mxu0 %v347
    %v1662 = vpop.f32.mrb[0].mxu0
    %v1663 = vadd.f32 0.0, %v1662
    %v1664 = vpop.f32.mrb[0].mxu0
    %1665 = vmatprep.mubr.f32.mxu0 0.0
    %1666 = vmatmul.mubr.f32.gmra.mrb[0].mxu0 %v350
    %v1667 = vpop.f32.mrb[0].mxu0
    %v1668 = vadd.f32 0.0, %v1667
    %v1669 = vpop.f32.mrb[0].mxu0
    %1670 = vmatprep.mubr.f32.mxu0 0.0
    %1671 = vmatmul.mubr.f32.gmra.mrb[0].mxu0 %v353
    %v1672 = vpop.f32.mrb[0].mxu0
    %v1673 = vadd.f32 0.0, %v1672
    %v1674 = vpop.f32.mrb[0].mxu0
    %1675 = vmatprep.mubr.f32.mxu0 0.0
    %1676 = vmatmul.mubr.f32.gmra.mrb[0].mxu0 %v356
    %v1677 = vpop.f32.mrb[0].mxu0
    %v1678 = vadd.f32 0.0, %v1677
    %v1679 = vpop.f32.mrb[0].mxu0
    %1680 = vdwg.mxu0
    %v1681 = vmul.f32 %v1643, 0.9
    %v1682 = vmul.f32 %v1648, 0.9
    %v1683 = vmul.f32 %v1653, 0.9
    %v1684 = vmul.f32 %v1658, 0.9
    %v1685 = vmul.f32 %v1663, 0.9
    %v1686 = vmul.f32 %v1668, 0.9
    %v1687 = vmul.f32 %v1673, 0.9
    %v1688 = vmul.f32 %v1678, 0.9
    %v1689 = vadd.f32 %v1681, %v932
    %v1690 = vadd.f32 %v1682, %v933
    %v1691 = vadd.f32 %v1683, %v934
    %v1692 = vadd.f32 %v1684, %v935
    %v1693 = vadd.f32 %v1685, %v936
    %v1694 = vadd.f32 %v1686, %v937
    %v1695 = vadd.f32 %v1687, %v938
    %v1696 = vadd.f32 %v1688, %v939
    %v1698 = vsel %vm316, %v1689, 0
    %v1701 = vsel %vm316, %v1690, 0
    %v1704 = vsel %vm316, %v1691, 0
    %v1707 = vsel %vm316, %v1692, 0
    %v1710 = vsel %vm316, %v1693, 0
    %v1713 = vsel %vm316, %v1694, 0
    %v1716 = vsel %vm316, %v1695, 0
    %v1719 = vsel %vm316, %v1696, 0
    %1721 = vmatprep.subr.mxu0 0.0
    %1722 = vmatpush1.msra.mxu0 %v1567
    %1723 = vmatprep.subr.mxu0 0.0
    %1724 = vmatpush1.msra.mxu0 %v1568
    %1725 = vmatprep.subr.mxu0 0.0
    %1726 = vmatpush1.msra.mxu0 %v1569
    %1727 = vmatprep.subr.mxu0 0.0
    %1728 = vmatpush1.msra.mxu0 %v1570
    %1729 = vmatprep.subr.mxu0 0.0
    %1730 = vmatpush1.msra.mxu0 0.0
    %1731 = vmatprep.subr.mxu0 0.0
    %1732 = vmatpush1.msra.mxu0 0.0
    %1733 = vmatprep.subr.mxu0 0.0
    %1734 = vmatpush1.msra.mxu0 0.0
    %1735 = vmatprep.subr.mxu0 0.0
    %1736 = vmatpush1.msra.mxu0 0.0
    %1737 = vmatprep.subr.mxu0 0.0
    %1738 = vmatpush1.msra.mxu0 0.0
    %1739 = vmatprep.subr.mxu0 0.0
    %1740 = vmatpush1.msra.mxu0 0.0
    %1741 = vmatprep.subr.mxu0 0.0
    %1742 = vmatpush1.msra.mxu0 0.0
    %1743 = vmatprep.subr.mxu0 0.0
    %1744 = vmatpush1.msra.mxu0 0.0
    %1745 = vmatprep.subr.mxu0 0.0
    %1746 = vmatpush1.msra.mxu0 0.0
    %1747 = vmatprep.subr.mxu0 0.0
    %1748 = vmatpush1.msra.mxu0 0.0
    %1749 = vmatprep.subr.mxu0 0.0
    %1750 = vmatpush1.msra.mxu0 0.0
    %1751 = vmatprep.subr.mxu0 0.0
    %1752 = vmatpush1.msra.mxu0 0.0
    %1753 = vmatprep.subr.mxu0 0.0
    %1754 = vmatpush1.msra.mxu0 0.0
    %1755 = vmatprep.subr.mxu0 0.0
    %1756 = vmatpush1.msra.mxu0 0.0
    %1757 = vmatprep.subr.mxu0 0.0
    %1758 = vmatpush1.msra.mxu0 0.0
    %1759 = vmatprep.subr.mxu0 0.0
    %1760 = vmatpush1.msra.mxu0 0.0
    %1761 = vmatprep.subr.mxu0 0.0
    %1762 = vmatpush1.msra.mxu0 0.0
    %1763 = vmatprep.subr.mxu0 0.0
    %1764 = vmatpush1.msra.mxu0 0.0
    %1765 = vmatprep.subr.mxu0 0.0
    %1766 = vmatpush1.msra.mxu0 0.0
    %1767 = vmatprep.subr.mxu0 0.0
    %1768 = vmatpush1.msra.mxu0 0.0
    %1769 = vmatprep.subr.mxu0 0.0
    %1770 = vmatpush1.msra.mxu0 0.0
    %1771 = vmatprep.subr.mxu0 0.0
    %1772 = vmatpush1.msra.mxu0 0.0
    %1773 = vmatprep.subr.mxu0 0.0
    %1774 = vmatpush1.msra.mxu0 0.0
    %1775 = vmatprep.subr.mxu0 0.0
    %1776 = vmatpush1.msra.mxu0 0.0
    %1777 = vmatprep.subr.mxu0 0.0
    %1778 = vmatpush1.msra.mxu0 0.0
    %1779 = vmatprep.subr.mxu0 0.0
    %1780 = vmatpush1.msra.mxu0 0.0
    %1781 = vmatprep.subr.mxu0 0.0
    %1782 = vmatpush1.msra.mxu0 0.0
    %1783 = vmatprep.subr.mxu0 0.0
    %1784 = vmatpush1.msra.mxu0 0.0
    %1785 = vmatprep.mubr.f32.mxu0 0.0
    %1786 = vmatmul.mubr.f32.gmra.mrb[0].mxu0 %v1698
    %v1787 = vpop.f32.mrb[0].mxu0
    %v1788 = vadd.f32 0.0, %v1787
    %v1789 = vpop.f32.mrb[0].mxu0
    %1790 = vmatprep.mubr.f32.mxu0 0.0
    %1791 = vmatmul.mubr.f32.gmra.mrb[0].mxu0 %v1701
    %v1792 = vpop.f32.mrb[0].mxu0
    %v1793 = vadd.f32 0.0, %v1792
    %v1794 = vpop.f32.mrb[0].mxu0
    %1795 = vmatprep.mubr.f32.mxu0 0.0
    %1796 = vmatmul.mubr.f32.gmra.mrb[0].mxu0 %v1704
    %v1797 = vpop.f32.mrb[0].mxu0
    %v1798 = vadd.f32 0.0, %v1797
    %v1799 = vpop.f32.mrb[0].mxu0
    %1800 = vmatprep.mubr.f32.mxu0 0.0
    %1801 = vmatmul.mubr.f32.gmra.mrb[0].mxu0 %v1707
    %v1802 = vpop.f32.mrb[0].mxu0
    %v1803 = vadd.f32 0.0, %v1802
    %v1804 = vpop.f32.mrb[0].mxu0
    %1805 = vmatprep.mubr.f32.mxu0 0.0
    %1806 = vmatmul.mubr.f32.gmra.mrb[0].mxu0 %v1710
    %v1807 = vpop.f32.mrb[0].mxu0
    %v1808 = vadd.f32 0.0, %v1807
    %v1809 = vpop.f32.mrb[0].mxu0
    %1810 = vmatprep.mubr.f32.mxu0 0.0
    %1811 = vmatmul.mubr.f32.gmra.mrb[0].mxu0 %v1713
    %v1812 = vpop.f32.mrb[0].mxu0
    %v1813 = vadd.f32 0.0, %v1812
    %v1814 = vpop.f32.mrb[0].mxu0
    %1815 = vmatprep.mubr.f32.mxu0 0.0
    %1816 = vmatmul.mubr.f32.gmra.mrb[0].mxu0 %v1716
    %v1817 = vpop.f32.mrb[0].mxu0
    %v1818 = vadd.f32 0.0, %v1817
    %v1819 = vpop.f32.mrb[0].mxu0
    %1820 = vmatprep.mubr.f32.mxu0 0.0
    %1821 = vmatmul.mubr.f32.gmra.mrb[0].mxu0 %v1719
    %v1822 = vpop.f32.mrb[0].mxu0
    %v1823 = vadd.f32 0.0, %v1822
    %v1824 = vpop.f32.mrb[0].mxu0
    %1825 = vdwg.mxu0
    %v1827 = vsel %vm316, %v1788, 0
    %v1830 = vsel %vm316, %v1793, 0
    %v1833 = vsel %vm316, %v1798, 0
    %v1836 = vsel %vm316, %v1803, 0
    %v1839 = vsel %vm316, %v1808, 0
    %v1842 = vsel %vm316, %v1813, 0
    %v1845 = vsel %vm316, %v1818, 0
    %v1848 = vsel %vm316, %v1823, 0
    %1850 = vmatprep.subr.mxu0 0.0
    %1851 = vmatpush1.msra.mxu0 %v1572
    %1852 = vmatprep.subr.mxu0 0.0
    %1853 = vmatpush1.msra.mxu0 %v1573
    %1854 = vmatprep.subr.mxu0 0.0
    %1855 = vmatpush1.msra.mxu0 %v1574
    %1856 = vmatprep.subr.mxu0 0.0
    %1857 = vmatpush1.msra.mxu0 %v1575
    %1858 = vmatprep.subr.mxu0 0.0
    %1859 = vmatpush1.msra.mxu0 0.0
    %1860 = vmatprep.subr.mxu0 0.0
    %1861 = vmatpush1.msra.mxu0 0.0
    %1862 = vmatprep.subr.mxu0 0.0
    %1863 = vmatpush1.msra.mxu0 0.0
    %1864 = vmatprep.subr.mxu0 0.0
    %1865 = vmatpush1.msra.mxu0 0.0
    %1866 = vmatprep.subr.mxu0 0.0
    %1867 = vmatpush1.msra.mxu0 0.0
    %1868 = vmatprep.subr.mxu0 0.0
    %1869 = vmatpush1.msra.mxu0 0.0
    %1870 = vmatprep.subr.mxu0 0.0
    %1871 = vmatpush1.msra.mxu0 0.0
    %1872 = vmatprep.subr.mxu0 0.0
    %1873 = vmatpush1.msra.mxu0 0.0
    %1874 = vmatprep.subr.mxu0 0.0
    %1875 = vmatpush1.msra.mxu0 0.0
    %1876 = vmatprep.subr.mxu0 0.0
    %1877 = vmatpush1.msra.mxu0 0.0
    %1878 = vmatprep.subr.mxu0 0.0
    %1879 = vmatpush1.msra.mxu0 0.0
    %1880 = vmatprep.subr.mxu0 0.0
    %1881 = vmatpush1.msra.mxu0 0.0
    %1882 = vmatprep.subr.mxu0 0.0
    %1883 = vmatpush1.msra.mxu0 0.0
    %1884 = vmatprep.subr.mxu0 0.0
    %1885 = vmatpush1.msra.mxu0 0.0
    %1886 = vmatprep.subr.mxu0 0.0
    %1887 = vmatpush1.msra.mxu0 0.0
    %1888 = vmatprep.subr.mxu0 0.0
    %1889 = vmatpush1.msra.mxu0 0.0
    %1890 = vmatprep.subr.mxu0 0.0
    %1891 = vmatpush1.msra.mxu0 0.0
    %1892 = vmatprep.subr.mxu0 0.0
    %1893 = vmatpush1.msra.mxu0 0.0
    %1894 = vmatprep.subr.mxu0 0.0
    %1895 = vmatpush1.msra.mxu0 0.0
    %1896 = vmatprep.subr.mxu0 0.0
    %1897 = vmatpush1.msra.mxu0 0.0
    %1898 = vmatprep.subr.mxu0 0.0
    %1899 = vmatpush1.msra.mxu0 0.0
    %1900 = vmatprep.subr.mxu0 0.0
    %1901 = vmatpush1.msra.mxu0 0.0
    %1902 = vmatprep.subr.mxu0 0.0
    %1903 = vmatpush1.msra.mxu0 0.0
    %1904 = vmatprep.subr.mxu0 0.0
    %1905 = vmatpush1.msra.mxu0 0.0
    %1906 = vmatprep.subr.mxu0 0.0
    %1907 = vmatpush1.msra.mxu0 0.0
    %1908 = vmatprep.subr.mxu0 0.0
    %1909 = vmatpush1.msra.mxu0 0.0
    %1910 = vmatprep.subr.mxu0 0.0
    %1911 = vmatpush1.msra.mxu0 0.0
    %1912 = vmatprep.subr.mxu0 0.0
    %1913 = vmatpush1.msra.mxu0 0.0
    %1914 = vmatprep.mubr.f32.mxu0 0.0
    %1915 = vmatmul.mubr.f32.gmra.mrb[0].mxu0 %v1827
    %v1916 = vpop.f32.mrb[0].mxu0
    %v1917 = vadd.f32 0.0, %v1916
    %v1918 = vpop.f32.mrb[0].mxu0
    %1919 = vmatprep.mubr.f32.mxu0 0.0
    %1920 = vmatmul.mubr.f32.gmra.mrb[0].mxu0 %v1830
    %v1921 = vpop.f32.mrb[0].mxu0
    %v1922 = vadd.f32 0.0, %v1921
    %v1923 = vpop.f32.mrb[0].mxu0
    %1924 = vmatprep.mubr.f32.mxu0 0.0
    %1925 = vmatmul.mubr.f32.gmra.mrb[0].mxu0 %v1833
    %v1926 = vpop.f32.mrb[0].mxu0
    %v1927 = vadd.f32 0.0, %v1926
    %v1928 = vpop.f32.mrb[0].mxu0
    %1929 = vmatprep.mubr.f32.mxu0 0.0
    %1930 = vmatmul.mubr.f32.gmra.mrb[0].mxu0 %v1836
    %v1931 = vpop.f32.mrb[0].mxu0
    %v1932 = vadd.f32 0.0, %v1931
    %v1933 = vpop.f32.mrb[0].mxu0
    %1934 = vmatprep.mubr.f32.mxu0 0.0
    %1935 = vmatmul.mubr.f32.gmra.mrb[0].mxu0 %v1839
    %v1936 = vpop.f32.mrb[0].mxu0
    %v1937 = vadd.f32 0.0, %v1936
    %v1938 = vpop.f32.mrb[0].mxu0
    %1939 = vmatprep.mubr.f32.mxu0 0.0
    %1940 = vmatmul.mubr.f32.gmra.mrb[0].mxu0 %v1842
    %v1941 = vpop.f32.mrb[0].mxu0
    %v1942 = vadd.f32 0.0, %v1941
    %v1943 = vpop.f32.mrb[0].mxu0
    %1944 = vmatprep.mubr.f32.mxu0 0.0
    %1945 = vmatmul.mubr.f32.gmra.mrb[0].mxu0 %v1845
    %v1946 = vpop.f32.mrb[0].mxu0
    %v1947 = vadd.f32 0.0, %v1946
    %v1948 = vpop.f32.mrb[0].mxu0
    %1949 = vmatprep.mubr.f32.mxu0 0.0
    %1950 = vmatmul.mubr.f32.gmra.mrb[0].mxu0 %v1848
    %v1951 = vpop.f32.mrb[0].mxu0
    %v1952 = vadd.f32 0.0, %v1951
    %v1953 = vpop.f32.mrb[0].mxu0
    %1954 = vdwg.mxu0
    %1963 = vrot.lane.b32.xlu0 %v1917, 32
    %v1964 = vpop.permute.xlu0 %1963
    %1965 = vrot.lane.b32.xlu0 %v1922, 32
    %v1966 = vpop.permute.xlu0 %1965
    %1967 = vrot.lane.b32.xlu0 %v1927, 32
    %v1968 = vpop.permute.xlu0 %1967
    %1969 = vrot.lane.b32.xlu0 %v1932, 32
    %v1970 = vpop.permute.xlu0 %1969
    %1971 = vrot.lane.b32.xlu0 %v1937, 32
    %v1972 = vpop.permute.xlu0 %1971
    %1973 = vrot.lane.b32.xlu0 %v1942, 32
    %v1974 = vpop.permute.xlu0 %1973
    %1975 = vrot.lane.b32.xlu0 %v1947, 32
    %v1976 = vpop.permute.xlu0 %1975
    %1977 = vrot.lane.b32.xlu0 %v1952, 32
    %v1978 = vpop.permute.xlu0 %1977
    %v1987 = vadd.f32 %v798, %v1964
    %v1988 = vadd.f32 %v803, %v1966
    %v1989 = vadd.f32 %v808, %v1968
    %v1990 = vadd.f32 %v813, %v1970
    %v1991 = vadd.f32 %v818, %v1972
    %v1992 = vadd.f32 %v823, %v1974
    %v1993 = vadd.f32 %v828, %v1976
    %v1994 = vadd.f32 %v833, %v1978
    %vm1995 = vcmp.gt.f32.partialorder %v1987, 0.0
    %vm1996 = vcmp.gt.f32.partialorder %v1988, 0.0
    %vm1997 = vcmp.gt.f32.partialorder %v1989, 0.0
    %vm1998 = vcmp.gt.f32.partialorder %v1990, 0.0
    %vm1999 = vcmp.gt.f32.partialorder %v1991, 0.0
    %vm2000 = vcmp.gt.f32.partialorder %v1992, 0.0
    %vm2001 = vcmp.gt.f32.partialorder %v1993, 0.0
    %vm2002 = vcmp.gt.f32.partialorder %v1994, 0.0
    %v2003 = vmin.f32 %v1987, 0.0
    %v2004 = vmin.f32 %v1988, 0.0
    %v2005 = vmin.f32 %v1989, 0.0
    %v2006 = vmin.f32 %v1990, 0.0
    %v2007 = vmin.f32 %v1991, 0.0
    %v2008 = vmin.f32 %v1992, 0.0
    %v2009 = vmin.f32 %v1993, 0.0
    %v2010 = vmin.f32 %v1994, 0.0
    %v2011 = vmul.f32 %v2003, 1.442695
    %v2012 = vpow.pop %v2011
    %v2013 = vmul.f32 %v2004, 1.442695
    %v2014 = vpow.pop %v2013
    %v2015 = vmul.f32 %v2005, 1.442695
    %v2016 = vpow.pop %v2015
    %v2017 = vmul.f32 %v2006, 1.442695
    %v2018 = vpow.pop %v2017
    %v2019 = vmul.f32 %v2007, 1.442695
    %v2020 = vpow.pop %v2019
    %v2021 = vmul.f32 %v2008, 1.442695
    %v2022 = vpow.pop %v2021
    %v2023 = vmul.f32 %v2009, 1.442695
    %v2024 = vpow.pop %v2023
    %v2025 = vmul.f32 %v2010, 1.442695
    %v2026 = vpow.pop %v2025
    %v2027 = vsub.f32 %v2012, 1.0
    %v2028 = vsub.f32 %v2014, 1.0
    %v2029 = vsub.f32 %v2016, 1.0
    %v2030 = vsub.f32 %v2018, 1.0
    %v2031 = vsub.f32 %v2020, 1.0
    %v2032 = vsub.f32 %v2022, 1.0
    %v2033 = vsub.f32 %v2024, 1.0
    %v2034 = vsub.f32 %v2026, 1.0
    %v2035 = vsel %vm1995, %v1987, %v2027
    %v2036 = vsel %vm1996, %v1988, %v2028
    %v2037 = vsel %vm1997, %v1989, %v2029
    %v2038 = vsel %vm1998, %v1990, %v2030
    %v2039 = vsel %vm1999, %v1991, %v2031
    %v2040 = vsel %vm2000, %v1992, %v2032
    %v2041 = vsel %vm2001, %v1993, %v2033
    %v2042 = vsel %vm2002, %v1994, %v2034
    %v2043 = vadd.f32 %v838, %v1964
    %v2044 = vadd.f32 %v843, %v1966
    %v2045 = vadd.f32 %v848, %v1968
    %v2046 = vadd.f32 %v853, %v1970
    %v2047 = vadd.f32 %v858, %v1972
    %v2048 = vadd.f32 %v863, %v1974
    %v2049 = vadd.f32 %v868, %v1976
    %v2050 = vadd.f32 %v873, %v1978
    %vm2051 = vcmp.gt.f32.partialorder %v2043, 0.0
    %vm2052 = vcmp.gt.f32.partialorder %v2044, 0.0
    %vm2053 = vcmp.gt.f32.partialorder %v2045, 0.0
    %vm2054 = vcmp.gt.f32.partialorder %v2046, 0.0
    %vm2055 = vcmp.gt.f32.partialorder %v2047, 0.0
    %vm2056 = vcmp.gt.f32.partialorder %v2048, 0.0
    %vm2057 = vcmp.gt.f32.partialorder %v2049, 0.0
    %vm2058 = vcmp.gt.f32.partialorder %v2050, 0.0
    %v2059 = vmin.f32 %v2043, 0.0
    %v2060 = vmin.f32 %v2044, 0.0
    %v2061 = vmin.f32 %v2045, 0.0
    %v2062 = vmin.f32 %v2046, 0.0
    %v2063 = vmin.f32 %v2047, 0.0
    %v2064 = vmin.f32 %v2048, 0.0
    %v2065 = vmin.f32 %v2049, 0.0
    %v2066 = vmin.f32 %v2050, 0.0
    %v2067 = vmul.f32 %v2059, 1.442695
    %v2068 = vpow.pop %v2067
    %v2069 = vmul.f32 %v2060, 1.442695
    %v2070 = vpow.pop %v2069
    %v2071 = vmul.f32 %v2061, 1.442695
    %v2072 = vpow.pop %v2071
    %v2073 = vmul.f32 %v2062, 1.442695
    %v2074 = vpow.pop %v2073
    %v2075 = vmul.f32 %v2063, 1.442695
    %v2076 = vpow.pop %v2075
    %v2077 = vmul.f32 %v2064, 1.442695
    %v2078 = vpow.pop %v2077
    %v2079 = vmul.f32 %v2065, 1.442695
    %v2080 = vpow.pop %v2079
    %v2081 = vmul.f32 %v2066, 1.442695
    %v2082 = vpow.pop %v2081
    %v2083 = vsub.f32 %v2068, 1.0
    %v2084 = vsub.f32 %v2070, 1.0
    %v2085 = vsub.f32 %v2072, 1.0
    %v2086 = vsub.f32 %v2074, 1.0
    %v2087 = vsub.f32 %v2076, 1.0
    %v2088 = vsub.f32 %v2078, 1.0
    %v2089 = vsub.f32 %v2080, 1.0
    %v2090 = vsub.f32 %v2082, 1.0
    %v2091 = vsel %vm2051, %v2043, %v2083
    %v2092 = vsel %vm2052, %v2044, %v2084
    %v2093 = vsel %vm2053, %v2045, %v2085
    %v2094 = vsel %vm2054, %v2046, %v2086
    %v2095 = vsel %vm2055, %v2047, %v2087
    %v2096 = vsel %vm2056, %v2048, %v2088
    %v2097 = vsel %vm2057, %v2049, %v2089
    %v2098 = vsel %vm2058, %v2050, %v2090
    %v2099 = vadd.f32 %v878, %v1964
    %v2100 = vadd.f32 %v883, %v1966
    %v2101 = vadd.f32 %v888, %v1968
    %v2102 = vadd.f32 %v893, %v1970
    %v2103 = vadd.f32 %v898, %v1972
    %v2104 = vadd.f32 %v903, %v1974
    %v2105 = vadd.f32 %v908, %v1976
    %v2106 = vadd.f32 %v913, %v1978
    %vm2107 = vcmp.gt.f32.partialorder %v2099, 0.0
    %vm2108 = vcmp.gt.f32.partialorder %v2100, 0.0
    %vm2109 = vcmp.gt.f32.partialorder %v2101, 0.0
    %vm2110 = vcmp.gt.f32.partialorder %v2102, 0.0
    %vm2111 = vcmp.gt.f32.partialorder %v2103, 0.0
    %vm2112 = vcmp.gt.f32.partialorder %v2104, 0.0
    %vm2113 = vcmp.gt.f32.partialorder %v2105, 0.0
    %vm2114 = vcmp.gt.f32.partialorder %v2106, 0.0
    %v2115 = vmin.f32 %v2099, 0.0
    %v2116 = vmin.f32 %v2100, 0.0
    %v2117 = vmin.f32 %v2101, 0.0
    %v2118 = vmin.f32 %v2102, 0.0
    %v2119 = vmin.f32 %v2103, 0.0
    %v2120 = vmin.f32 %v2104, 0.0
    %v2121 = vmin.f32 %v2105, 0.0
    %v2122 = vmin.f32 %v2106, 0.0
    %v2123 = vmul.f32 %v2115, 1.442695
    %v2124 = vpow.pop %v2123
    %v2125 = vmul.f32 %v2116, 1.442695
    %v2126 = vpow.pop %v2125
    %v2127 = vmul.f32 %v2117, 1.442695
    %v2128 = vpow.pop %v2127
    %v2129 = vmul.f32 %v2118, 1.442695
    %v2130 = vpow.pop %v2129
    %v2131 = vmul.f32 %v2119, 1.442695
    %v2132 = vpow.pop %v2131
    %v2133 = vmul.f32 %v2120, 1.442695
    %v2134 = vpow.pop %v2133
    %v2135 = vmul.f32 %v2121, 1.442695
    %v2136 = vpow.pop %v2135
    %v2137 = vmul.f32 %v2122, 1.442695
    %v2138 = vpow.pop %v2137
    %v2139 = vsub.f32 %v2124, 1.0
    %v2140 = vsub.f32 %v2126, 1.0
    %v2141 = vsub.f32 %v2128, 1.0
    %v2142 = vsub.f32 %v2130, 1.0
    %v2143 = vsub.f32 %v2132, 1.0
    %v2144 = vsub.f32 %v2134, 1.0
    %v2145 = vsub.f32 %v2136, 1.0
    %v2146 = vsub.f32 %v2138, 1.0
    %v2147 = vsel %vm2107, %v2099, %v2139
    %v2148 = vsel %vm2108, %v2100, %v2140
    %v2149 = vsel %vm2109, %v2101, %v2141
    %v2150 = vsel %vm2110, %v2102, %v2142
    %v2151 = vsel %vm2111, %v2103, %v2143
    %v2152 = vsel %vm2112, %v2104, %v2144
    %v2153 = vsel %vm2113, %v2105, %v2145
    %v2154 = vsel %vm2114, %v2106, %v2146
    %v2155 = vmax.f32 %v2035, %v2091
    %v2156 = vmax.f32 %v2036, %v2092
    %v2157 = vmax.f32 %v2037, %v2093
    %v2158 = vmax.f32 %v2038, %v2094
    %v2159 = vmax.f32 %v2039, %v2095
    %v2160 = vmax.f32 %v2040, %v2096
    %v2161 = vmax.f32 %v2041, %v2097
    %v2162 = vmax.f32 %v2042, %v2098
    %v2163 = vmax.f32 %v2155, %v2147
    %v2164 = vmax.f32 %v2156, %v2148
    %v2165 = vmax.f32 %v2157, %v2149
    %v2166 = vmax.f32 %v2158, %v2150
    %v2167 = vmax.f32 %v2159, %v2151
    %v2168 = vmax.f32 %v2160, %v2152
    %v2169 = vmax.f32 %v2161, %v2153
    %v2170 = vmax.f32 %v2162, %v2154
    %v2171 = vsub.f32 %v2035, %v2163
    %v2172 = vsub.f32 %v2036, %v2164
    %v2173 = vsub.f32 %v2037, %v2165
    %v2174 = vsub.f32 %v2038, %v2166
    %v2175 = vsub.f32 %v2039, %v2167
    %v2176 = vsub.f32 %v2040, %v2168
    %v2177 = vsub.f32 %v2041, %v2169
    %v2178 = vsub.f32 %v2042, %v2170
    %v2179 = vmul.f32 %v2171, 1.442695
    %v2180 = vpow.pop %v2179
    %v2181 = vmul.f32 %v2172, 1.442695
    %v2182 = vpow.pop %v2181
    %v2183 = vmul.f32 %v2173, 1.442695
    %v2184 = vpow.pop %v2183
    %v2185 = vmul.f32 %v2174, 1.442695
    %v2186 = vpow.pop %v2185
    %v2187 = vmul.f32 %v2175, 1.442695
    %v2188 = vpow.pop %v2187
    %v2189 = vmul.f32 %v2176, 1.442695
    %v2190 = vpow.pop %v2189
    %v2191 = vmul.f32 %v2177, 1.442695
    %v2192 = vpow.pop %v2191
    %v2193 = vmul.f32 %v2178, 1.442695
    %v2194 = vpow.pop %v2193
    %v2195 = vsub.f32 %v2091, %v2163
    %v2196 = vsub.f32 %v2092, %v2164
    %v2197 = vsub.f32 %v2093, %v2165
    %v2198 = vsub.f32 %v2094, %v2166
    %v2199 = vsub.f32 %v2095, %v2167
    %v2200 = vsub.f32 %v2096, %v2168
    %v2201 = vsub.f32 %v2097, %v2169
    %v2202 = vsub.f32 %v2098, %v2170
    %v2203 = vmul.f32 %v2195, 1.442695
    %v2204 = vpow.pop %v2203
    %v2205 = vmul.f32 %v2196, 1.442695
    %v2206 = vpow.pop %v2205
    %v2207 = vmul.f32 %v2197, 1.442695
    %v2208 = vpow.pop %v2207
    %v2209 = vmul.f32 %v2198, 1.442695
    %v2210 = vpow.pop %v2209
    %v2211 = vmul.f32 %v2199, 1.442695
    %v2212 = vpow.pop %v2211
    %v2213 = vmul.f32 %v2200, 1.442695
    %v2214 = vpow.pop %v2213
    %v2215 = vmul.f32 %v2201, 1.442695
    %v2216 = vpow.pop %v2215
    %v2217 = vmul.f32 %v2202, 1.442695
    %v2218 = vpow.pop %v2217
    %v2219 = vsub.f32 %v2147, %v2163
    %v2220 = vsub.f32 %v2148, %v2164
    %v2221 = vsub.f32 %v2149, %v2165
    %v2222 = vsub.f32 %v2150, %v2166
    %v2223 = vsub.f32 %v2151, %v2167
    %v2224 = vsub.f32 %v2152, %v2168
    %v2225 = vsub.f32 %v2153, %v2169
    %v2226 = vsub.f32 %v2154, %v2170
    %v2227 = vmul.f32 %v2219, 1.442695
    %v2228 = vpow.pop %v2227
    %v2229 = vmul.f32 %v2220, 1.442695
    %v2230 = vpow.pop %v2229
    %v2231 = vmul.f32 %v2221, 1.442695
    %v2232 = vpow.pop %v2231
    %v2233 = vmul.f32 %v2222, 1.442695
    %v2234 = vpow.pop %v2233
    %v2235 = vmul.f32 %v2223, 1.442695
    %v2236 = vpow.pop %v2235
    %v2237 = vmul.f32 %v2224, 1.442695
    %v2238 = vpow.pop %v2237
    %v2239 = vmul.f32 %v2225, 1.442695
    %v2240 = vpow.pop %v2239
    %v2241 = vmul.f32 %v2226, 1.442695
    %v2242 = vpow.pop %v2241
    %2251 = vrot.lane.b32.xlu0 %v2180, 96
    %v2252 = vpop.permute.xlu0 %2251
    %2253 = vrot.lane.b32.xlu0 %v2182, 96
    %v2254 = vpop.permute.xlu0 %2253
    %2255 = vrot.lane.b32.xlu0 %v2184, 96
    %v2256 = vpop.permute.xlu0 %2255
    %2257 = vrot.lane.b32.xlu0 %v2186, 96
    %v2258 = vpop.permute.xlu0 %2257
    %2259 = vrot.lane.b32.xlu0 %v2188, 96
    %v2260 = vpop.permute.xlu0 %2259
    %2261 = vrot.lane.b32.xlu0 %v2190, 96
    %v2262 = vpop.permute.xlu0 %2261
    %2263 = vrot.lane.b32.xlu0 %v2192, 96
    %v2264 = vpop.permute.xlu0 %2263
    %2265 = vrot.lane.b32.xlu0 %v2194, 96
    %v2266 = vpop.permute.xlu0 %2265
    %v2275 = vmul.f32 %v425, %v2252
    %v2276 = vmul.f32 %v430, %v2254
    %v2277 = vmul.f32 %v435, %v2256
    %v2278 = vmul.f32 %v440, %v2258
    %v2279 = vmul.f32 %v445, %v2260
    %v2280 = vmul.f32 %v450, %v2262
    %v2281 = vmul.f32 %v455, %v2264
    %v2282 = vmul.f32 %v460, %v2266
    %2291 = vrot.lane.b32.xlu0 %v2204, 96
    %v2292 = vpop.permute.xlu0 %2291
    %2293 = vrot.lane.b32.xlu0 %v2206, 96
    %v2294 = vpop.permute.xlu0 %2293
    %2295 = vrot.lane.b32.xlu0 %v2208, 96
    %v2296 = vpop.permute.xlu0 %2295
    %2297 = vrot.lane.b32.xlu0 %v2210, 96
    %v2298 = vpop.permute.xlu0 %2297
    %2299 = vrot.lane.b32.xlu0 %v2212, 96
    %v2300 = vpop.permute.xlu0 %2299
    %2301 = vrot.lane.b32.xlu0 %v2214, 96
    %v2302 = vpop.permute.xlu0 %2301
    %2303 = vrot.lane.b32.xlu0 %v2216, 96
    %v2304 = vpop.permute.xlu0 %2303
    %2305 = vrot.lane.b32.xlu0 %v2218, 96
    %v2306 = vpop.permute.xlu0 %2305
    %v2315 = vmul.f32 %v616, %v2292
    %v2316 = vmul.f32 %v618, %v2294
    %v2317 = vmul.f32 %v620, %v2296
    %v2318 = vmul.f32 %v622, %v2298
    %v2319 = vmul.f32 %v624, %v2300
    %v2320 = vmul.f32 %v626, %v2302
    %v2321 = vmul.f32 %v628, %v2304
    %v2322 = vmul.f32 %v630, %v2306
    %v2323 = vadd.f32 %v2275, %v2315
    %v2324 = vadd.f32 %v2276, %v2316
    %v2325 = vadd.f32 %v2277, %v2317
    %v2326 = vadd.f32 %v2278, %v2318
    %v2327 = vadd.f32 %v2279, %v2319
    %v2328 = vadd.f32 %v2280, %v2320
    %v2329 = vadd.f32 %v2281, %v2321
    %v2330 = vadd.f32 %v2282, %v2322
    %2339 = vrot.lane.b32.xlu0 %v2228, 96
    %v2340 = vpop.permute.xlu0 %2339
    %2341 = vrot.lane.b32.xlu0 %v2230, 96
    %v2342 = vpop.permute.xlu0 %2341
    %2343 = vrot.lane.b32.xlu0 %v2232, 96
    %v2344 = vpop.permute.xlu0 %2343
    %2345 = vrot.lane.b32.xlu0 %v2234, 96
    %v2346 = vpop.permute.xlu0 %2345
    %2347 = vrot.lane.b32.xlu0 %v2236, 96
    %v2348 = vpop.permute.xlu0 %2347
    %2349 = vrot.lane.b32.xlu0 %v2238, 96
    %v2350 = vpop.permute.xlu0 %2349
    %2351 = vrot.lane.b32.xlu0 %v2240, 96
    %v2352 = vpop.permute.xlu0 %2351
    %2353 = vrot.lane.b32.xlu0 %v2242, 96
    %v2354 = vpop.permute.xlu0 %2353
    %v2363 = vmul.f32 %v648, %v2340
    %v2364 = vmul.f32 %v650, %v2342
    %v2365 = vmul.f32 %v652, %v2344
    %v2366 = vmul.f32 %v654, %v2346
    %v2367 = vmul.f32 %v656, %v2348
    %v2368 = vmul.f32 %v658, %v2350
    %v2369 = vmul.f32 %v660, %v2352
    %v2370 = vmul.f32 %v662, %v2354
    %v2371 = vadd.f32 %v2323, %v2363
    %v2372 = vadd.f32 %v2324, %v2364
    %v2373 = vadd.f32 %v2325, %v2365
    %v2374 = vadd.f32 %v2326, %v2366
    %v2375 = vadd.f32 %v2327, %v2367
    %v2376 = vadd.f32 %v2328, %v2368
    %v2377 = vadd.f32 %v2329, %v2369
    %v2378 = vadd.f32 %v2330, %v2370
    %v2379 = vadd.f32 %v2180, %v2204
    %v2380 = vadd.f32 %v2182, %v2206
    %v2381 = vadd.f32 %v2184, %v2208
    %v2382 = vadd.f32 %v2186, %v2210
    %v2383 = vadd.f32 %v2188, %v2212
    %v2384 = vadd.f32 %v2190, %v2214
    %v2385 = vadd.f32 %v2192, %v2216
    %v2386 = vadd.f32 %v2194, %v2218
    %v2387 = vadd.f32 %v2379, %v2228
    %v2388 = vadd.f32 %v2380, %v2230
    %v2389 = vadd.f32 %v2381, %v2232
    %v2390 = vadd.f32 %v2382, %v2234
    %v2391 = vadd.f32 %v2383, %v2236
    %v2392 = vadd.f32 %v2384, %v2238
    %v2393 = vadd.f32 %v2385, %v2240
    %v2394 = vadd.f32 %v2386, %v2242
    %2403 = vrot.lane.b32.xlu0 %v2387, 96
    %v2404 = vpop.permute.xlu0 %2403
    %2405 = vrot.lane.b32.xlu0 %v2388, 96
    %v2406 = vpop.permute.xlu0 %2405
    %2407 = vrot.lane.b32.xlu0 %v2389, 96
    %v2408 = vpop.permute.xlu0 %2407
    %2409 = vrot.lane.b32.xlu0 %v2390, 96
    %v2410 = vpop.permute.xlu0 %2409
    %2411 = vrot.lane.b32.xlu0 %v2391, 96
    %v2412 = vpop.permute.xlu0 %2411
    %2413 = vrot.lane.b32.xlu0 %v2392, 96
    %v2414 = vpop.permute.xlu0 %2413
    %2415 = vrot.lane.b32.xlu0 %v2393, 96
    %v2416 = vpop.permute.xlu0 %2415
    %2417 = vrot.lane.b32.xlu0 %v2394, 96
    %v2418 = vpop.permute.xlu0 %2417
    %v2427 = vrcp.pop %v2404
    %v2428 = vmul.f32 %v2371, %v2427
    %v2429 = vrcp.pop %v2406
    %v2430 = vmul.f32 %v2372, %v2429
    %v2431 = vrcp.pop %v2408
    %v2432 = vmul.f32 %v2373, %v2431
    %v2433 = vrcp.pop %v2410
    %v2434 = vmul.f32 %v2374, %v2433
    %v2435 = vrcp.pop %v2412
    %v2436 = vmul.f32 %v2375, %v2435
    %v2437 = vrcp.pop %v2414
    %v2438 = vmul.f32 %v2376, %v2437
    %v2439 = vrcp.pop %v2416
    %v2440 = vmul.f32 %v2377, %v2439
    %v2441 = vrcp.pop %v2418
    %v2442 = vmul.f32 %v2378, %v2441
    %v2443 = vmul.f32 %v1788, 0.9
    %v2444 = vmul.f32 %v1793, 0.9
    %v2445 = vmul.f32 %v1798, 0.9
    %v2446 = vmul.f32 %v1803, 0.9
    %v2447 = vmul.f32 %v1808, 0.9
    %v2448 = vmul.f32 %v1813, 0.9
    %v2449 = vmul.f32 %v1818, 0.9
    %v2450 = vmul.f32 %v1823, 0.9
    %v2451 = vmul.f32 %v2428, 0.1
    %v2452 = vmul.f32 %v2430, 0.1
    %v2453 = vmul.f32 %v2432, 0.1
    %v2454 = vmul.f32 %v2434, 0.1
    %v2455 = vmul.f32 %v2436, 0.1
    %v2456 = vmul.f32 %v2438, 0.1
    %v2457 = vmul.f32 %v2440, 0.1
    %v2458 = vmul.f32 %v2442, 0.1
    %v2459 = vadd.f32 %v2443, %v2451
    %v2460 = vadd.f32 %v2444, %v2452
    %v2461 = vadd.f32 %v2445, %v2453
    %v2462 = vadd.f32 %v2446, %v2454
    %v2463 = vadd.f32 %v2447, %v2455
    %v2464 = vadd.f32 %v2448, %v2456
    %v2465 = vadd.f32 %v2449, %v2457
    %v2466 = vadd.f32 %v2450, %v2458
    %v2467 = vmax.f32 %v2459, 0.0
    %v2468 = vmax.f32 %v2460, 0.0
    %v2469 = vmax.f32 %v2461, 0.0
    %v2470 = vmax.f32 %v2462, 0.0
    %v2471 = vmax.f32 %v2463, 0.0
    %v2472 = vmax.f32 %v2464, 0.0
    %v2473 = vmax.f32 %v2465, 0.0
    %v2474 = vmax.f32 %v2466, 0.0
    %v2475 = vld [vmem:[%s7] sm:$0xff]
    %v2476 = vld [vmem:[%s7 + $0x8] sm:$0xff]
    %v2477 = vld [vmem:[%s7 + $0x10] sm:$0xff]
    %v2478 = vld [vmem:[%s7 + $0x18] sm:$0xff]
    %v2479 = vld [vmem:[%s8] sm:$0x1]
    %v2481 = vlaneseq
    %v2482 = vshrl.u32 %v2481, 7
    %v2483 = vsub.s32 0, %v2482
    %v2484 = vrot.slane %v2479, %v2483
    %v2487 = vsel %vm316, %v2467, 0
    %v2490 = vsel %vm316, %v2468, 0
    %v2493 = vsel %vm316, %v2469, 0
    %v2496 = vsel %vm316, %v2470, 0
    %v2499 = vsel %vm316, %v2471, 0
    %v2502 = vsel %vm316, %v2472, 0
    %v2505 = vsel %vm316, %v2473, 0
    %v2508 = vsel %vm316, %v2474, 0
    %2510 = vmatprep.subr.mxu0 0.0
    %2511 = vmatpush1.msra.mxu0 %v2475
    %2512 = vmatprep.subr.mxu0 0.0
    %2513 = vmatpush1.msra.mxu0 %v2476
    %2514 = vmatprep.subr.mxu0 0.0
    %2515 = vmatpush1.msra.mxu0 %v2477
    %2516 = vmatprep.subr.mxu0 0.0
    %2517 = vmatpush1.msra.mxu0 %v2478
    %2518 = vmatprep.subr.mxu0 0.0
    %2519 = vmatpush1.msra.mxu0 0.0
    %2520 = vmatprep.subr.mxu0 0.0
    %2521 = vmatpush1.msra.mxu0 0.0
    %2522 = vmatprep.subr.mxu0 0.0
    %2523 = vmatpush1.msra.mxu0 0.0
    %2524 = vmatprep.subr.mxu0 0.0
    %2525 = vmatpush1.msra.mxu0 0.0
    %2526 = vmatprep.subr.mxu0 0.0
    %2527 = vmatpush1.msra.mxu0 0.0
    %2528 = vmatprep.subr.mxu0 0.0
    %2529 = vmatpush1.msra.mxu0 0.0
    %2530 = vmatprep.subr.mxu0 0.0
    %2531 = vmatpush1.msra.mxu0 0.0
    %2532 = vmatprep.subr.mxu0 0.0
    %2533 = vmatpush1.msra.mxu0 0.0
    %2534 = vmatprep.subr.mxu0 0.0
    %2535 = vmatpush1.msra.mxu0 0.0
    %2536 = vmatprep.subr.mxu0 0.0
    %2537 = vmatpush1.msra.mxu0 0.0
    %2538 = vmatprep.subr.mxu0 0.0
    %2539 = vmatpush1.msra.mxu0 0.0
    %2540 = vmatprep.subr.mxu0 0.0
    %2541 = vmatpush1.msra.mxu0 0.0
    %2542 = vmatprep.subr.mxu0 0.0
    %2543 = vmatpush1.msra.mxu0 0.0
    %2544 = vmatprep.subr.mxu0 0.0
    %2545 = vmatpush1.msra.mxu0 0.0
    %2546 = vmatprep.subr.mxu0 0.0
    %2547 = vmatpush1.msra.mxu0 0.0
    %2548 = vmatprep.subr.mxu0 0.0
    %2549 = vmatpush1.msra.mxu0 0.0
    %2550 = vmatprep.subr.mxu0 0.0
    %2551 = vmatpush1.msra.mxu0 0.0
    %2552 = vmatprep.subr.mxu0 0.0
    %2553 = vmatpush1.msra.mxu0 0.0
    %2554 = vmatprep.subr.mxu0 0.0
    %2555 = vmatpush1.msra.mxu0 0.0
    %2556 = vmatprep.subr.mxu0 0.0
    %2557 = vmatpush1.msra.mxu0 0.0
    %2558 = vmatprep.subr.mxu0 0.0
    %2559 = vmatpush1.msra.mxu0 0.0
    %2560 = vmatprep.subr.mxu0 0.0
    %2561 = vmatpush1.msra.mxu0 0.0
    %2562 = vmatprep.subr.mxu0 0.0
    %2563 = vmatpush1.msra.mxu0 0.0
    %2564 = vmatprep.subr.mxu0 0.0
    %2565 = vmatpush1.msra.mxu0 0.0
    %2566 = vmatprep.subr.mxu0 0.0
    %2567 = vmatpush1.msra.mxu0 0.0
    %2568 = vmatprep.subr.mxu0 0.0
    %2569 = vmatpush1.msra.mxu0 0.0
    %2570 = vmatprep.subr.mxu0 0.0
    %2571 = vmatpush1.msra.mxu0 0.0
    %2572 = vmatprep.subr.mxu0 0.0
    %2573 = vmatpush1.msra.mxu0 0.0
    %2574 = vmatprep.mubr.f32.mxu0 0.0
    %2575 = vmatmul.mubr.f32.gmra.mrb[0].mxu0 %v2487
    %v2576 = vpop.f32.mrb[0].mxu0
    %v2577 = vadd.f32 %v2484, %v2576
    %v2578 = vpop.f32.mrb[0].mxu0
    %2579 = vmatprep.mubr.f32.mxu0 0.0
    %2580 = vmatmul.mubr.f32.gmra.mrb[0].mxu0 %v2490
    %v2581 = vpop.f32.mrb[0].mxu0
    %v2582 = vadd.f32 %v2484, %v2581
    %v2583 = vpop.f32.mrb[0].mxu0
    %2584 = vmatprep.mubr.f32.mxu0 0.0
    %2585 = vmatmul.mubr.f32.gmra.mrb[0].mxu0 %v2493
    %v2586 = vpop.f32.mrb[0].mxu0
    %v2587 = vadd.f32 %v2484, %v2586
    %v2588 = vpop.f32.mrb[0].mxu0
    %2589 = vmatprep.mubr.f32.mxu0 0.0
    %2590 = vmatmul.mubr.f32.gmra.mrb[0].mxu0 %v2496
    %v2591 = vpop.f32.mrb[0].mxu0
    %v2592 = vadd.f32 %v2484, %v2591
    %v2593 = vpop.f32.mrb[0].mxu0
    %2594 = vmatprep.mubr.f32.mxu0 0.0
    %2595 = vmatmul.mubr.f32.gmra.mrb[0].mxu0 %v2499
    %v2596 = vpop.f32.mrb[0].mxu0
    %v2597 = vadd.f32 %v2484, %v2596
    %v2598 = vpop.f32.mrb[0].mxu0
    %2599 = vmatprep.mubr.f32.mxu0 0.0
    %2600 = vmatmul.mubr.f32.gmra.mrb[0].mxu0 %v2502
    %v2601 = vpop.f32.mrb[0].mxu0
    %v2602 = vadd.f32 %v2484, %v2601
    %v2603 = vpop.f32.mrb[0].mxu0
    %2604 = vmatprep.mubr.f32.mxu0 0.0
    %2605 = vmatmul.mubr.f32.gmra.mrb[0].mxu0 %v2505
    %v2606 = vpop.f32.mrb[0].mxu0
    %v2607 = vadd.f32 %v2484, %v2606
    %v2608 = vpop.f32.mrb[0].mxu0
    %2609 = vmatprep.mubr.f32.mxu0 0.0
    %2610 = vmatmul.mubr.f32.gmra.mrb[0].mxu0 %v2508
    %v2611 = vpop.f32.mrb[0].mxu0
    %v2612 = vadd.f32 %v2484, %v2611
    %v2613 = vpop.f32.mrb[0].mxu0
    %2614 = vdwg.mxu0
    %vm2615 = vcmask 64512
    %v2616 = vsel %vm2615, %v2577, -inf
    %2617 = vmax.xlane.f32.xlu0 %v2616
    %v2618 = vpop.xlane.xlu0 %2617
    %v2619 = vsel %vm2615, %v2582, -inf
    %2620 = vmax.xlane.f32.xlu0 %v2619
    %v2621 = vpop.xlane.xlu0 %2620
    %v2622 = vsel %vm2615, %v2587, -inf
    %2623 = vmax.xlane.f32.xlu0 %v2622
    %v2624 = vpop.xlane.xlu0 %2623
    %v2625 = vsel %vm2615, %v2592, -inf
    %2626 = vmax.xlane.f32.xlu0 %v2625
    %v2627 = vpop.xlane.xlu0 %2626
    %v2628 = vsel %vm2615, %v2597, -inf
    %2629 = vmax.xlane.f32.xlu0 %v2628
    %v2630 = vpop.xlane.xlu0 %2629
    %v2631 = vsel %vm2615, %v2602, -inf
    %2632 = vmax.xlane.f32.xlu0 %v2631
    %v2633 = vpop.xlane.xlu0 %2632
    %v2634 = vsel %vm2615, %v2607, -inf
    %2635 = vmax.xlane.f32.xlu0 %v2634
    %v2636 = vpop.xlane.xlu0 %2635
    %v2637 = vsel %vm2615, %v2612, -inf
    %2638 = vmax.xlane.f32.xlu0 %v2637
    %v2639 = vpop.xlane.xlu0 %2638
    %v2640 = vsub.f32 %v2577, %v2618
    %v2641 = vsub.f32 %v2582, %v2621
    %v2642 = vsub.f32 %v2587, %v2624
    %v2643 = vsub.f32 %v2592, %v2627
    %v2644 = vsub.f32 %v2597, %v2630
    %v2645 = vsub.f32 %v2602, %v2633
    %v2646 = vsub.f32 %v2607, %v2636
    %v2647 = vsub.f32 %v2612, %v2639
    %v2648 = vmul.f32 %v2640, 1.442695
    %v2649 = vpow.pop %v2648
    %v2650 = vmul.f32 %v2641, 1.442695
    %v2651 = vpow.pop %v2650
    %v2652 = vmul.f32 %v2642, 1.442695
    %v2653 = vpow.pop %v2652
    %v2654 = vmul.f32 %v2643, 1.442695
    %v2655 = vpow.pop %v2654
    %v2656 = vmul.f32 %v2644, 1.442695
    %v2657 = vpow.pop %v2656
    %v2658 = vmul.f32 %v2645, 1.442695
    %v2659 = vpow.pop %v2658
    %v2660 = vmul.f32 %v2646, 1.442695
    %v2661 = vpow.pop %v2660
    %v2662 = vmul.f32 %v2647, 1.442695
    %v2663 = vpow.pop %v2662
    %v2664 = vsel %vm2615, %v2649, 0.0
    %2665 = vadd.xlane.f32.xlu0 %v2664
    %v2666 = vpop.xlane.xlu0 %2665
    %v2667 = vsel %vm2615, %v2651, 0.0
    %2668 = vadd.xlane.f32.xlu0 %v2667
    %v2669 = vpop.xlane.xlu0 %2668
    %v2670 = vsel %vm2615, %v2653, 0.0
    %2671 = vadd.xlane.f32.xlu0 %v2670
    %v2672 = vpop.xlane.xlu0 %2671
    %v2673 = vsel %vm2615, %v2655, 0.0
    %2674 = vadd.xlane.f32.xlu0 %v2673
    %v2675 = vpop.xlane.xlu0 %2674
    %v2676 = vsel %vm2615, %v2657, 0.0
    %2677 = vadd.xlane.f32.xlu0 %v2676
    %v2678 = vpop.xlane.xlu0 %2677
    %v2679 = vsel %vm2615, %v2659, 0.0
    %2680 = vadd.xlane.f32.xlu0 %v2679
    %v2681 = vpop.xlane.xlu0 %2680
    %v2682 = vsel %vm2615, %v2661, 0.0
    %2683 = vadd.xlane.f32.xlu0 %v2682
    %v2684 = vpop.xlane.xlu0 %2683
    %v2685 = vsel %vm2615, %v2663, 0.0
    %2686 = vadd.xlane.f32.xlu0 %v2685
    %v2687 = vpop.xlane.xlu0 %2686
    %v2688 = vlog2.pop %v2666
    %v2689 = vmul.f32 %v2688, 0.6931472
    %v2690 = vlog2.pop %v2669
    %v2691 = vmul.f32 %v2690, 0.6931472
    %v2692 = vlog2.pop %v2672
    %v2693 = vmul.f32 %v2692, 0.6931472
    %v2694 = vlog2.pop %v2675
    %v2695 = vmul.f32 %v2694, 0.6931472
    %v2696 = vlog2.pop %v2678
    %v2697 = vmul.f32 %v2696, 0.6931472
    %v2698 = vlog2.pop %v2681
    %v2699 = vmul.f32 %v2698, 0.6931472
    %v2700 = vlog2.pop %v2684
    %v2701 = vmul.f32 %v2700, 0.6931472
    %v2702 = vlog2.pop %v2687
    %v2703 = vmul.f32 %v2702, 0.6931472
    %v2704 = vsub.f32 %v2640, %v2689
    %v2705 = vsub.f32 %v2641, %v2691
    %v2706 = vsub.f32 %v2642, %v2693
    %v2707 = vsub.f32 %v2643, %v2695
    %v2708 = vsub.f32 %v2644, %v2697
    %v2709 = vsub.f32 %v2645, %v2699
    %v2710 = vsub.f32 %v2646, %v2701
    %v2711 = vsub.f32 %v2647, %v2703
    %2712 = vst.msk [vmem:[%s9] sm:$0xff] %vm2615, %v2704
    %2713 = vst.msk [vmem:[%s9 + $0x8] sm:$0xff] %vm2615, %v2705
    %2714 = vst.msk [vmem:[%s9 + $0x10] sm:$0xff] %vm2615, %v2706
    %2715 = vst.msk [vmem:[%s9 + $0x18] sm:$0xff] %vm2615, %v2707
    %2716 = vst.msk [vmem:[%s9 + $0x20] sm:$0xff] %vm2615, %v2708
    %2717 = vst.msk [vmem:[%s9 + $0x28] sm:$0xff] %vm2615, %v2709
    %2718 = vst.msk [vmem:[%s9 + $0x30] sm:$0xff] %vm2615, %v2710
    %2719 = vst.msk [vmem:[%s9 + $0x38] sm:$0xff] %vm2615, %v2711
    // Predicated region
    $region50: #{tpu_custom_call.1} parent=1 // pred_check
      _
    $region51: #{tpu_custom_call.1} parent=1 // pred_check_branch
      %2721 = sbr.rel (0) target = $region53
    $region52: #{tpu_custom_call.1} parent=1 // pred_region
      _
    $region53: #{tpu_custom_call.1} parent=1 // pred_fallthru
      _
    // Predicated region
    $region54: #{tpu_custom_call.1} parent=1 // pred_check
      _
    $region55: #{tpu_custom_call.1} parent=1 // pred_check_branch
      %2723 = sbr.rel (0) target = $region57
    $region56: #{tpu_custom_call.1} parent=1 // pred_region
      _
    $region57: #{tpu_custom_call.1} parent=1 // pred_fallthru
      _
    %2724 = vsyncpa [#allocation3], 1
    %2725 = vsyncpa [#allocation5], 1

</llo_original>
